<compile_context>
chip_gen: v5e
topology: v5e:2x2
jax: 0.10.0
libtpu: 0.0.40
codegen_flags: <defaults>
</compile_context>

<pallas_src>
import functools
import math

import jax
import jax.numpy as jnp
from jax.experimental import pallas as pl
from jax.experimental.pallas import tpu as pltpu


def _pick_tile(dim, pref):
    """Use `pref` (already (8,128)-aligned) if it evenly tiles `dim`, else fall back to
    the full dimension (always a legal block shape; fine for small / demo shapes)."""
    return pref if dim % pref == 0 else dim


# ---------------------------------------------------------------------------
# LayerNorm kernel (torch semantics: unbiased std, a*(x-mean)/(std+eps)+b)
# ---------------------------------------------------------------------------
def _layernorm_kernel(x_ref, a_ref, b_ref, o_ref, *, eps):
    x = x_ref[...].astype(jnp.float32)
    d = x.shape[-1]
    mean = jnp.mean(x, axis=-1, keepdims=True)
    xc = x - mean
    var = jnp.sum(xc * xc, axis=-1, keepdims=True) * (1.0 / (d - 1))  # Bessel, as torch.std
    y = a_ref[...] * xc / (jnp.sqrt(var) + eps) + b_ref[...]
    o_ref[...] = y.astype(o_ref.dtype)


def layernorm(x2d, a, b, eps=1e-6):
    N, D = x2d.shape
    tm = _pick_tile(N, 256)
    return pl.pallas_call(
        functools.partial(_layernorm_kernel, eps=eps),
        grid=(N // tm,),
        in_specs=[pl.BlockSpec((tm, D), lambda i: (i, 0)),
                  pl.BlockSpec((1, D), lambda i: (0, 0)),
                  pl.BlockSpec((1, D), lambda i: (0, 0))],
        out_specs=pl.BlockSpec((tm, D), lambda i: (i, 0)),
        out_shape=jax.ShapeDtypeStruct((N, D), jnp.float32),
        compiler_params=pltpu.CompilerParams(
            dimension_semantics=("parallel",),
            vmem_limit_bytes=32 * 1024 * 1024),
    )(x2d, a.reshape(1, D), b.reshape(1, D))


# ---------------------------------------------------------------------------
# Tiled linear kernel: y = x @ w_t + b  (+ ReLU) (+ residual), bf16 MXU, f32 acc
# ---------------------------------------------------------------------------
def _linear_kernel(*refs, relu, has_residual):
    if has_residual:
        x_ref, w_ref, b_ref, res_ref, o_ref, acc_ref = refs
    else:
        x_ref, w_ref, b_ref, o_ref, acc_ref = refs
        res_ref = None

    k = pl.program_id(2)

    @pl.when(k == 0)
    def _():
        acc_ref[...] = jnp.zeros_like(acc_ref)

    acc_ref[...] += jnp.dot(x_ref[...].astype(jnp.bfloat16), w_ref[...],
                            preferred_element_type=jnp.float32)

    @pl.when(k == pl.num_programs(2) - 1)
    def _():
        y = acc_ref[...] + b_ref[...]
        if relu:
            y = jnp.maximum(y, 0.0)
        if res_ref is not None:
            y = y + res_ref[...]
        o_ref[...] = y.astype(o_ref.dtype)


def linear(x2d, w_t, b, *, residual=None, relu=False):
    """x2d: (N, d_in) f32, w_t: (d_in, d_out) bf16 (pre-transposed), b: (d_out,) f32."""
    N, d_in = x2d.shape
    d_out = w_t.shape[1]
    tm = _pick_tile(N, 256)
    tn = _pick_tile(d_out, 256)
    tk = _pick_tile(d_in, 512)

    in_specs = [pl.BlockSpec((tm, tk), lambda i, j, k: (i, k)),
                pl.BlockSpec((tk, tn), lambda i, j, k: (k, j)),
                pl.BlockSpec((1, tn), lambda i, j, k: (0, j))]
    args = [x2d, w_t, b.reshape(1, d_out)]
    if residual is not None:
        in_specs.append(pl.BlockSpec((tm, tn), lambda i, j, k: (i, j)))
        args.append(residual)

    bytes_accessed = int(x2d.size * 4 + w_t.size * 2 + d_out * 4 + N * d_out * 4
                         + (residual.size * 4 if residual is not None else 0))

    return pl.pallas_call(
        functools.partial(_linear_kernel, relu=relu,
                          has_residual=residual is not None),
        grid=(N // tm, d_out // tn, d_in // tk),
        in_specs=in_specs,
        out_specs=pl.BlockSpec((tm, tn), lambda i, j, k: (i, j)),
        out_shape=jax.ShapeDtypeStruct((N, d_out), jnp.float32),
        scratch_shapes=[pltpu.VMEM((tm, tn), jnp.float32)],
        compiler_params=pltpu.CompilerParams(
            dimension_semantics=("parallel", "parallel", "arbitrary"),
            vmem_limit_bytes=32 * 1024 * 1024),
        cost_estimate=pl.CostEstimate(flops=2 * N * d_in * d_out,
                                      transcendentals=0,
                                      bytes_accessed=bytes_accessed),
    )(*args)


# ---------------------------------------------------------------------------
# Self-attention kernel: one batch per grid step, all heads, lane-dense output
# ---------------------------------------------------------------------------
def _attn_kernel(qkv_ref, o_ref, *, n_heads, d_k, scale):
    d_model = n_heads * d_k
    qkv = qkv_ref[...]                                    # (S, 3*d_model), one dense load
    for head in range(n_heads):                           # small H -> static unroll
        c0 = head * d_k
        qh = (qkv[:, c0:c0 + d_k] * scale).astype(jnp.bfloat16)         # pre-scaled Q
        kh = qkv[:, d_model + c0:d_model + c0 + d_k].astype(jnp.bfloat16)
        vh = qkv[:, 2 * d_model + c0:2 * d_model + c0 + d_k].astype(jnp.bfloat16)

        s = jnp.dot(qh, kh.T, preferred_element_type=jnp.float32)       # (S, S) f32
        s = s - jnp.max(s, axis=-1, keepdims=True)
        p = jnp.exp(s)
        p = p * pl.reciprocal(jnp.sum(p, axis=-1, keepdims=True), approx=True)
        # TODO(synk): nn.Dropout on p_attn is a training-time stochastic op; eval identity.
        o_ref[:, c0:c0 + d_k] = jnp.dot(p.astype(jnp.bfloat16), vh,
                                        preferred_element_type=jnp.float32
                                        ).astype(o_ref.dtype)


def attention_pallas(qkv, batch, seq, n_heads, d_k):
    """qkv: (B*S, 3*d_model) f32 -> (B*S, d_model) f32; unmasked self-attention."""
    d_model = n_heads * d_k
    bytes_accessed = int(qkv.size * 4 + batch * seq * d_model * 4)
    return pl.pallas_call(
        functools.partial(_attn_kernel, n_heads=n_heads, d_k=d_k,
                          scale=1.0 / math.sqrt(d_k)),
        grid=(batch,),
        in_specs=[pl.BlockSpec((seq, 3 * d_model), lambda b: (b, 0))],
        out_specs=pl.BlockSpec((seq, d_model), lambda b: (b, 0)),
        out_shape=jax.ShapeDtypeStruct((batch * seq, d_model), jnp.float32),
        compiler_params=pltpu.CompilerParams(
            dimension_semantics=("parallel",),
            vmem_limit_bytes=32 * 1024 * 1024),
        cost_estimate=pl.CostEstimate(
            flops=4 * batch * n_heads * seq * seq * d_k,
            transcendentals=batch * n_heads * seq * seq,
            bytes_accessed=bytes_accessed),
    )(qkv)


# ---------------------------------------------------------------------------
# EncoderLayer forward (glue in plain JAX, hot paths in Pallas)
# ---------------------------------------------------------------------------
def encoder_layer(params, x):
    B, S, D = x.shape
    h = params["h"]
    d_k = D // h
    x2 = x.reshape(B * S, D).astype(jnp.float32)

    # --- sublayer 0: x + SelfAttn(LayerNorm(x)) ---
    n1 = layernorm(x2, params["ln1_a"], params["ln1_b"])
    qkv = linear(n1, params["w_qkv_t"], params["b_qkv"])            # fused Q/K/V projection
    ctx = attention_pallas(qkv, B, S, h, d_k)                       # (B*S, D), no transposes
    x2 = linear(ctx, params["w_o_t"], params["b_o"], residual=x2)   # out-proj + residual fused
    # TODO(synk): SublayerConnection dropout is training-time; eval-mode identity here.

    # --- sublayer 1: x + FFN(LayerNorm(x)) ---
    n2 = layernorm(x2, params["ln2_a"], params["ln2_b"])
    hid = linear(n2, params["w_ff1_t"], params["b_ff1"], relu=True)
    x2 = linear(hid, params["w_ff2_t"], params["b_ff2"], residual=x2)

    return x2.reshape(B, S, D)


# ---------------------------------------------------------------------------
# Deterministic parameter init + example run
# ---------------------------------------------------------------------------
def make_params(key, d_model, n_heads, d_ff):
    ks = jax.random.split(key, 12)

    def lin(kw, kb, d_in, d_out):
        bound = 1.0 / math.sqrt(d_in)        # torch.nn.Linear default init scale
        w = jax.random.uniform(kw, (d_out, d_in), jnp.float32, -bound, bound)
        b = jax.random.uniform(kb, (d_out,), jnp.float32, -bound, bound)
        return w, b

    wq, bq = lin(ks[0], ks[1], d_model, d_model)
    wk, bk = lin(ks[2], ks[3], d_model, d_model)
    wv, bv = lin(ks[4], ks[5], d_model, d_model)
    wo, bo = lin(ks[6], ks[7], d_model, d_model)
    w1, b1 = lin(ks[8], ks[9], d_model, d_ff)
    w2, b2 = lin(ks[10], ks[11], d_ff, d_model)

    # Fused QKV weight: (d_model, 3*d_model), pre-transposed, bf16 for the MXU.
    w_qkv_t = jnp.concatenate([wq.T, wk.T, wv.T], axis=1).astype(jnp.bfloat16)
    b_qkv = jnp.concatenate([bq, bk, bv], axis=0)

    return dict(
        h=n_heads,
        ln1_a=jnp.ones((d_model,), jnp.float32),
        ln1_b=jnp.zeros((d_model,), jnp.float32),
        ln2_a=jnp.ones((d_model,), jnp.float32),
        ln2_b=jnp.zeros((d_model,), jnp.float32),
        w_qkv_t=w_qkv_t, b_qkv=b_qkv,
        w_o_t=wo.T.astype(jnp.bfloat16), b_o=bo,
        w_ff1_t=w1.T.astype(jnp.bfloat16), b_ff1=b1,
        w_ff2_t=w2.T.astype(jnp.bfloat16), b_ff2=b2,
    )


if __name__ == "__main__":
    B, S, d_model, n_heads, d_ff = 2, 8, 32, 4, 128

    root = jax.random.PRNGKey(0)
    kp, kx = jax.random.split(root, 2)
    params = make_params(kp, d_model, n_heads, d_ff)
    x = jax.random.normal(kx, (B, S, d_model), jnp.float32)

    fwd = jax.jit(functools.partial(encoder_layer, params))
    out = fwd(x)
    jax.block_until_ready(out)

    assert out.shape == (B, S, d_model)
    assert bool(jnp.all(jnp.isfinite(out)))
    print("KERNEL_OK")
</pallas_src>

<mosaic_0001>
module attributes {stable_mosaic.version = 11 : i64} {
  func.func @_layernorm_kernel(%arg0: i32, %arg1: memref<16x32xf32, #tpu.memory_space<vmem>>, %arg2: memref<1x32xf32, #tpu.memory_space<vmem>>, %arg3: memref<1x32xf32, #tpu.memory_space<vmem>>, %arg4: memref<16x32xf32, #tpu.memory_space<vmem>>) attributes {dimension_semantics = [#tpu.dimension_semantics<parallel>], iteration_bounds = array<i64: 1>, scalar_prefetch = 0 : i64, scratch_operands = 0 : i64, tpu.core_type = #tpu.core_type<tc>, window_params = [{transform_indices = @transform_0, window_bounds = array<i64: 16, 32>}, {pipeline_mode = #tpu.pipeline_mode<synchronous>, transform_indices = @transform_1, window_bounds = array<i64: 1, 32>}, {pipeline_mode = #tpu.pipeline_mode<synchronous>, transform_indices = @transform_2, window_bounds = array<i64: 1, 32>}, {transform_indices = @transform_3, window_bounds = array<i64: 16, 32>}]} {
    %c0 = arith.constant 0 : index
    %c0_0 = arith.constant 0 : index
    %0 = vector.load %arg1[%c0, %c0_0] : memref<16x32xf32, #tpu.memory_space<vmem>>, vector<16x32xf32>
    %cst = arith.constant dense<0.000000e+00> : vector<16xf32>
    %1 = vector.multi_reduction <add>, %0, %cst [1] : vector<16x32xf32> to vector<16xf32>
    %2 = vector.shape_cast %1 : vector<16xf32> to vector<16x1xf32>
    %cst_1 = arith.constant 3.200000e+01 : f32
    %3 = vector.broadcast %cst_1 : f32 to vector<16x1xf32>
    %4 = arith.divf %2, %3 : vector<16x1xf32>
    %5 = vector.broadcast %4 : vector<16x1xf32> to vector<16x32xf32>
    %6 = arith.subf %0, %5 : vector<16x32xf32>
    %7 = arith.mulf %6, %6 : vector<16x32xf32>
    %cst_2 = arith.constant dense<0.000000e+00> : vector<16xf32>
    %8 = vector.multi_reduction <add>, %7, %cst_2 [1] : vector<16x32xf32> to vector<16xf32>
    %9 = vector.shape_cast %8 : vector<16xf32> to vector<16x1xf32>
    %cst_3 = arith.constant 0.0322580636 : f32
    %10 = vector.broadcast %cst_3 : f32 to vector<16x1xf32>
    %11 = arith.mulf %9, %10 : vector<16x1xf32>
    %c0_4 = arith.constant 0 : index
    %c0_5 = arith.constant 0 : index
    %12 = vector.load %arg2[%c0_4, %c0_5] : memref<1x32xf32, #tpu.memory_space<vmem>>, vector<1x32xf32>
    %13 = vector.broadcast %12 : vector<1x32xf32> to vector<16x32xf32>
    %14 = arith.mulf %13, %6 : vector<16x32xf32>
    %15 = math.sqrt %11 : vector<16x1xf32>
    %cst_6 = arith.constant 9.99999997E-7 : f32
    %16 = vector.broadcast %cst_6 : f32 to vector<16x1xf32>
    %17 = arith.addf %15, %16 : vector<16x1xf32>
    %18 = vector.broadcast %17 : vector<16x1xf32> to vector<16x32xf32>
    %19 = arith.divf %14, %18 : vector<16x32xf32>
    %c0_7 = arith.constant 0 : index
    %c0_8 = arith.constant 0 : index
    %20 = vector.load %arg3[%c0_7, %c0_8] : memref<1x32xf32, #tpu.memory_space<vmem>>, vector<1x32xf32>
    %21 = vector.broadcast %20 : vector<1x32xf32> to vector<16x32xf32>
    %22 = arith.addf %19, %21 : vector<16x32xf32>
    %c0_9 = arith.constant 0 : index
    %c0_10 = arith.constant 0 : index
    %23 = vector.load %arg4[%c0_9, %c0_10] : memref<16x32xf32, #tpu.memory_space<vmem>>, vector<16x32xf32>
    tpu.vector_store %arg4[%c0_9, %c0_10], %22 {strides = array<i32>} : memref<16x32xf32, #tpu.memory_space<vmem>>, vector<16x32xf32>,
    return
  }
  func.func @transform_0(%arg0: i32) -> (i32, i32) {
    %c0_i32 = arith.constant 0 : i32
    %c0_i32_0 = arith.constant 0 : i32
    return %arg0, %c0_i32 : i32, i32
  }
  func.func @transform_1(%arg0: i32) -> (i32, i32) {
    %c0_i32 = arith.constant 0 : i32
    %c0_i32_0 = arith.constant 0 : i32
    %c0_i32_1 = arith.constant 0 : i32
    return %c0_i32, %c0_i32_0 : i32, i32
  }
  func.func @transform_2(%arg0: i32) -> (i32, i32) {
    %c0_i32 = arith.constant 0 : i32
    %c0_i32_0 = arith.constant 0 : i32
    %c0_i32_1 = arith.constant 0 : i32
    return %c0_i32, %c0_i32_0 : i32, i32
  }
  func.func @transform_3(%arg0: i32) -> (i32, i32) {
    %c0_i32 = arith.constant 0 : i32
    %c0_i32_0 = arith.constant 0 : i32
    return %arg0, %c0_i32 : i32, i32
  }
}

module attributes {stable_mosaic.version = 11 : i64} {
  func.func @_attn_kernel(%arg0: i32, %arg1: memref<8x96xf32, #tpu.memory_space<vmem>>, %arg2: memref<8x32xf32, #tpu.memory_space<vmem>>) attributes {dimension_semantics = [#tpu.dimension_semantics<parallel>], iteration_bounds = array<i64: 2>, scalar_prefetch = 0 : i64, scratch_operands = 0 : i64, tpu.core_type = #tpu.core_type<tc>, window_params = [{transform_indices = @transform_0, window_bounds = array<i64: 8, 96>}, {transform_indices = @transform_1, window_bounds = array<i64: 8, 32>}]} {
    %c0 = arith.constant 0 : index
    %c0_0 = arith.constant 0 : index
    %0 = vector.load %arg1[%c0, %c0_0] : memref<8x96xf32, #tpu.memory_space<vmem>>, vector<8x96xf32>
    %1 = vector.extract_strided_slice %0 {offsets = [0, 0], sizes = [8, 8], strides = [1, 1]} : vector<8x96xf32> to vector<8x8xf32>
    %cst = arith.constant 0.353553385 : f32
    %2 = vector.broadcast %cst : f32 to vector<8x8xf32>
    %3 = arith.mulf %1, %2 : vector<8x8xf32>
    %4 = arith.truncf %3 : vector<8x8xf32> to vector<8x8xbf16>
    %5 = vector.extract_strided_slice %0 {offsets = [0, 32], sizes = [8, 8], strides = [1, 1]} : vector<8x96xf32> to vector<8x8xf32>
    %6 = arith.truncf %5 : vector<8x8xf32> to vector<8x8xbf16>
    %7 = vector.extract_strided_slice %0 {offsets = [0, 64], sizes = [8, 8], strides = [1, 1]} : vector<8x96xf32> to vector<8x8xf32>
    %8 = arith.truncf %7 : vector<8x8xf32> to vector<8x8xbf16>
    %9 = tpu.transpose %6, [1, 0] : vector<8x8xbf16> -> vector<8x8xbf16>
    %cst_1 = arith.constant dense<0.000000e+00> : vector<8x8xf32>
    %10 = tpu.matmul %4, %9, %cst_1 {dimension_numbers = #tpu.dot_dimension_numbers<[1], [0], [0], [1], [0, 0, 1, 1], [], []>} : vector<8x8xbf16>, vector<8x8xbf16>, vector<8x8xf32> -> vector<8x8xf32>
    %cst_2 = arith.constant dense<0xFF800000> : vector<8xf32>
    %11 = vector.multi_reduction <maximumf>, %10, %cst_2 [1] : vector<8x8xf32> to vector<8xf32>
    %12 = vector.shape_cast %11 : vector<8xf32> to vector<8x1xf32>
    %13 = vector.broadcast %12 : vector<8x1xf32> to vector<8x8xf32>
    %14 = arith.subf %10, %13 : vector<8x8xf32>
    %15 = math.exp %14 : vector<8x8xf32>
    %cst_3 = arith.constant dense<0.000000e+00> : vector<8xf32>
    %16 = vector.multi_reduction <add>, %15, %cst_3 [1] : vector<8x8xf32> to vector<8xf32>
    %17 = vector.shape_cast %16 : vector<8xf32> to vector<8x1xf32>
    %18 = tpu.reciprocal %17 {approx = true} : vector<8x1xf32> -> vector<8x1xf32>
    %19 = vector.broadcast %18 : vector<8x1xf32> to vector<8x8xf32>
    %20 = arith.mulf %15, %19 : vector<8x8xf32>
    %21 = arith.truncf %20 : vector<8x8xf32> to vector<8x8xbf16>
    %cst_4 = arith.constant dense<0.000000e+00> : vector<8x8xf32>
    %22 = tpu.matmul %21, %8, %cst_4 {dimension_numbers = #tpu.dot_dimension_numbers<[1], [0], [0], [1], [0, 0, 1, 1], [], []>} : vector<8x8xbf16>, vector<8x8xbf16>, vector<8x8xf32> -> vector<8x8xf32>
    %c0_5 = arith.constant 0 : index
    %c0_6 = arith.constant 0 : index
    %23 = vector.load %arg2[%c0_5, %c0_6] : memref<8x32xf32, #tpu.memory_space<vmem>>, vector<8x8xf32>
    tpu.vector_store %arg2[%c0_5, %c0_6], %22 {strides = array<i32>} : memref<8x32xf32, #tpu.memory_space<vmem>>, vector<8x8xf32>,
    %24 = vector.extract_strided_slice %0 {offsets = [0, 8], sizes = [8, 8], strides = [1, 1]} : vector<8x96xf32> to vector<8x8xf32>
    %cst_7 = arith.constant 0.353553385 : f32
    %25 = vector.broadcast %cst_7 : f32 to vector<8x8xf32>
    %26 = arith.mulf %24, %25 : vector<8x8xf32>
    %27 = arith.truncf %26 : vector<8x8xf32> to vector<8x8xbf16>
    %28 = vector.extract_strided_slice %0 {offsets = [0, 40], sizes = [8, 8], strides = [1, 1]} : vector<8x96xf32> to vector<8x8xf32>
    %29 = arith.truncf %28 : vector<8x8xf32> to vector<8x8xbf16>
    %30 = vector.extract_strided_slice %0 {offsets = [0, 72], sizes = [8, 8], strides = [1, 1]} : vector<8x96xf32> to vector<8x8xf32>
    %31 = arith.truncf %30 : vector<8x8xf32> to vector<8x8xbf16>
    %32 = tpu.transpose %29, [1, 0] : vector<8x8xbf16> -> vector<8x8xbf16>
    %cst_8 = arith.constant dense<0.000000e+00> : vector<8x8xf32>
    %33 = tpu.matmul %27, %32, %cst_8 {dimension_numbers = #tpu.dot_dimension_numbers<[1], [0], [0], [1], [0, 0, 1, 1], [], []>} : vector<8x8xbf16>, vector<8x8xbf16>, vector<8x8xf32> -> vector<8x8xf32>
    %cst_9 = arith.constant dense<0xFF800000> : vector<8xf32>
    %34 = vector.multi_reduction <maximumf>, %33, %cst_9 [1] : vector<8x8xf32> to vector<8xf32>
    %35 = vector.shape_cast %34 : vector<8xf32> to vector<8x1xf32>
    %36 = vector.broadcast %35 : vector<8x1xf32> to vector<8x8xf32>
    %37 = arith.subf %33, %36 : vector<8x8xf32>
    %38 = math.exp %37 : vector<8x8xf32>
    %cst_10 = arith.constant dense<0.000000e+00> : vector<8xf32>
    %39 = vector.multi_reduction <add>, %38, %cst_10 [1] : vector<8x8xf32> to vector<8xf32>
    %40 = vector.shape_cast %39 : vector<8xf32> to vector<8x1xf32>
    %41 = tpu.reciprocal %40 {approx = true} : vector<8x1xf32> -> vector<8x1xf32>
    %42 = vector.broadcast %41 : vector<8x1xf32> to vector<8x8xf32>
    %43 = arith.mulf %38, %42 : vector<8x8xf32>
    %44 = arith.truncf %43 : vector<8x8xf32> to vector<8x8xbf16>
    %cst_11 = arith.constant dense<0.000000e+00> : vector<8x8xf32>
    %45 = tpu.matmul %44, %31, %cst_11 {dimension_numbers = #tpu.dot_dimension_numbers<[1], [0], [0], [1], [0, 0, 1, 1], [], []>} : vector<8x8xbf16>, vector<8x8xbf16>, vector<8x8xf32> -> vector<8x8xf32>
    %c0_12 = arith.constant 0 : index
    %c8 = arith.constant 8 : index
    %46 = vector.load %arg2[%c0_12, %c8] : memref<8x32xf32, #tpu.memory_space<vmem>>, vector<8x8xf32>
    tpu.vector_store %arg2[%c0_12, %c8], %45 {strides = array<i32>} : memref<8x32xf32, #tpu.memory_space<vmem>>, vector<8x8xf32>,
    %47 = vector.extract_strided_slice %0 {offsets = [0, 16], sizes = [8, 8], strides = [1, 1]} : vector<8x96xf32> to vector<8x8xf32>
    %cst_13 = arith.constant 0.353553385 : f32
    %48 = vector.broadcast %cst_13 : f32 to vector<8x8xf32>
    %49 = arith.mulf %47, %48 : vector<8x8xf32>
    %50 = arith.truncf %49 : vector<8x8xf32> to vector<8x8xbf16>
    %51 = vector.extract_strided_slice %0 {offsets = [0, 48], sizes = [8, 8], strides = [1, 1]} : vector<8x96xf32> to vector<8x8xf32>
    %52 = arith.truncf %51 : vector<8x8xf32> to vector<8x8xbf16>
    %53 = vector.extract_strided_slice %0 {offsets = [0, 80], sizes = [8, 8], strides = [1, 1]} : vector<8x96xf32> to vector<8x8xf32>
    %54 = arith.truncf %53 : vector<8x8xf32> to vector<8x8xbf16>
    %55 = tpu.transpose %52, [1, 0] : vector<8x8xbf16> -> vector<8x8xbf16>
    %cst_14 = arith.constant dense<0.000000e+00> : vector<8x8xf32>
    %56 = tpu.matmul %50, %55, %cst_14 {dimension_numbers = #tpu.dot_dimension_numbers<[1], [0], [0], [1], [0, 0, 1, 1], [], []>} : vector<8x8xbf16>, vector<8x8xbf16>, vector<8x8xf32> -> vector<8x8xf32>
    %cst_15 = arith.constant dense<0xFF800000> : vector<8xf32>
    %57 = vector.multi_reduction <maximumf>, %56, %cst_15 [1] : vector<8x8xf32> to vector<8xf32>
    %58 = vector.shape_cast %57 : vector<8xf32> to vector<8x1xf32>
    %59 = vector.broadcast %58 : vector<8x1xf32> to vector<8x8xf32>
    %60 = arith.subf %56, %59 : vector<8x8xf32>
    %61 = math.exp %60 : vector<8x8xf32>
    %cst_16 = arith.constant dense<0.000000e+00> : vector<8xf32>
    %62 = vector.multi_reduction <add>, %61, %cst_16 [1] : vector<8x8xf32> to vector<8xf32>
    %63 = vector.shape_cast %62 : vector<8xf32> to vector<8x1xf32>
    %64 = tpu.reciprocal %63 {approx = true} : vector<8x1xf32> -> vector<8x1xf32>
    %65 = vector.broadcast %64 : vector<8x1xf32> to vector<8x8xf32>
    %66 = arith.mulf %61, %65 : vector<8x8xf32>
    %67 = arith.truncf %66 : vector<8x8xf32> to vector<8x8xbf16>
    %cst_17 = arith.constant dense<0.000000e+00> : vector<8x8xf32>
    %68 = tpu.matmul %67, %54, %cst_17 {dimension_numbers = #tpu.dot_dimension_numbers<[1], [0], [0], [1], [0, 0, 1, 1], [], []>} : vector<8x8xbf16>, vector<8x8xbf16>, vector<8x8xf32> -> vector<8x8xf32>
    %c0_18 = arith.constant 0 : index
    %c16 = arith.constant 16 : index
    %69 = vector.load %arg2[%c0_18, %c16] : memref<8x32xf32, #tpu.memory_space<vmem>>, vector<8x8xf32>
    tpu.vector_store %arg2[%c0_18, %c16], %68 {strides = array<i32>} : memref<8x32xf32, #tpu.memory_space<vmem>>, vector<8x8xf32>,
    %70 = vector.extract_strided_slice %0 {offsets = [0, 24], sizes = [8, 8], strides = [1, 1]} : vector<8x96xf32> to vector<8x8xf32>
    %cst_19 = arith.constant 0.353553385 : f32
    %71 = vector.broadcast %cst_19 : f32 to vector<8x8xf32>
    %72 = arith.mulf %70, %71 : vector<8x8xf32>
    %73 = arith.truncf %72 : vector<8x8xf32> to vector<8x8xbf16>
    %74 = vector.extract_strided_slice %0 {offsets = [0, 56], sizes = [8, 8], strides = [1, 1]} : vector<8x96xf32> to vector<8x8xf32>
    %75 = arith.truncf %74 : vector<8x8xf32> to vector<8x8xbf16>
    %76 = vector.extract_strided_slice %0 {offsets = [0, 88], sizes = [8, 8], strides = [1, 1]} : vector<8x96xf32> to vector<8x8xf32>
    %77 = arith.truncf %76 : vector<8x8xf32> to vector<8x8xbf16>
    %78 = tpu.transpose %75, [1, 0] : vector<8x8xbf16> -> vector<8x8xbf16>
    %cst_20 = arith.constant dense<0.000000e+00> : vector<8x8xf32>
    %79 = tpu.matmul %73, %78, %cst_20 {dimension_numbers = #tpu.dot_dimension_numbers<[1], [0], [0], [1], [0, 0, 1, 1], [], []>} : vector<8x8xbf16>, vector<8x8xbf16>, vector<8x8xf32> -> vector<8x8xf32>
    %cst_21 = arith.constant dense<0xFF800000> : vector<8xf32>
    %80 = vector.multi_reduction <maximumf>, %79, %cst_21 [1] : vector<8x8xf32> to vector<8xf32>
    %81 = vector.shape_cast %80 : vector<8xf32> to vector<8x1xf32>
    %82 = vector.broadcast %81 : vector<8x1xf32> to vector<8x8xf32>
    %83 = arith.subf %79, %82 : vector<8x8xf32>
    %84 = math.exp %83 : vector<8x8xf32>
    %cst_22 = arith.constant dense<0.000000e+00> : vector<8xf32>
    %85 = vector.multi_reduction <add>, %84, %cst_22 [1] : vector<8x8xf32> to vector<8xf32>
    %86 = vector.shape_cast %85 : vector<8xf32> to vector<8x1xf32>
    %87 = tpu.reciprocal %86 {approx = true} : vector<8x1xf32> -> vector<8x1xf32>
    %88 = vector.broadcast %87 : vector<8x1xf32> to vector<8x8xf32>
    %89 = arith.mulf %84, %88 : vector<8x8xf32>
    %90 = arith.truncf %89 : vector<8x8xf32> to vector<8x8xbf16>
    %cst_23 = arith.constant dense<0.000000e+00> : vector<8x8xf32>
    %91 = tpu.matmul %90, %77, %cst_23 {dimension_numbers = #tpu.dot_dimension_numbers<[1], [0], [0], [1], [0, 0, 1, 1], [], []>} : vector<8x8xbf16>, vector<8x8xbf16>, vector<8x8xf32> -> vector<8x8xf32>
    %c0_24 = arith.constant 0 : index
    %c24 = arith.constant 24 : index
    %92 = vector.load %arg2[%c0_24, %c24] : memref<8x32xf32, #tpu.memory_space<vmem>>, vector<8x8xf32>
    tpu.vector_store %arg2[%c0_24, %c24], %91 {strides = array<i32>} : memref<8x32xf32, #tpu.memory_space<vmem>>, vector<8x8xf32>,
    return
  }
  func.func @transform_0(%arg0: i32) -> (i32, i32) {
    %c0_i32 = arith.constant 0 : i32
    %c0_i32_0 = arith.constant 0 : i32
    return %arg0, %c0_i32 : i32, i32
  }
  func.func @transform_1(%arg0: i32) -> (i32, i32) {
    %c0_i32 = arith.constant 0 : i32
    %c0_i32_0 = arith.constant 0 : i32
    return %arg0, %c0_i32 : i32, i32
  }
}

module attributes {stable_mosaic.version = 11 : i64} {
  func.func @_linear_kernel(%arg0: i32, %arg1: i32, %arg2: i32, %arg3: memref<16x32xf32, #tpu.memory_space<vmem>>, %arg4: memref<32x96xbf16, #tpu.memory_space<vmem>>, %arg5: memref<1x96xf32, #tpu.memory_space<vmem>>, %arg6: memref<16x96xf32, #tpu.memory_space<vmem>>, %arg7: memref<16x96xf32, #tpu.memory_space<vmem>>) attributes {dimension_semantics = [#tpu.dimension_semantics<parallel>, #tpu.dimension_semantics<parallel>, #tpu.dimension_semantics<arbitrary>], iteration_bounds = array<i64: 1, 1, 1>, scalar_prefetch = 0 : i64, scratch_operands = 1 : i64, tpu.core_type = #tpu.core_type<tc>, window_params = [{transform_indices = @transform_0, window_bounds = array<i64: 16, 32>}, {transform_indices = @transform_1, window_bounds = array<i64: 32, 96>}, {transform_indices = @transform_2, window_bounds = array<i64: 1, 96>}, {transform_indices = @transform_3, window_bounds = array<i64: 16, 96>}]} {
    %c0_i32 = arith.constant 0 : i32
    %0 = arith.cmpi eq, %arg2, %c0_i32 : i32
    %1 = arith.extui %0 : i1 to i32
    %c0_i32_0 = arith.constant 0 : i32
    %2 = arith.cmpi ne, %1, %c0_i32_0 : i32
    scf.if %2 {
      %cst_10 = arith.constant 0.000000e+00 : f32
      %13 = vector.broadcast %cst_10 : f32 to vector<16x96xf32>
      %c0_11 = arith.constant 0 : index
      %c0_12 = arith.constant 0 : index
      %14 = vector.load %arg7[%c0_11, %c0_12] : memref<16x96xf32, #tpu.memory_space<vmem>>, vector<16x96xf32>
      tpu.vector_store %arg7[%c0_11, %c0_12], %13 {strides = array<i32>} : memref<16x96xf32, #tpu.memory_space<vmem>>, vector<16x96xf32>,
    } else {
    }
    %c0 = arith.constant 0 : index
    %c0_1 = arith.constant 0 : index
    %3 = vector.load %arg7[%c0, %c0_1] : memref<16x96xf32, #tpu.memory_space<vmem>>, vector<16x96xf32>
    %c0_2 = arith.constant 0 : index
    %c0_3 = arith.constant 0 : index
    %4 = vector.load %arg3[%c0_2, %c0_3] : memref<16x32xf32, #tpu.memory_space<vmem>>, vector<16x32xf32>
    %5 = arith.truncf %4 : vector<16x32xf32> to vector<16x32xbf16>
    %c0_4 = arith.constant 0 : index
    %c0_5 = arith.constant 0 : index
    %6 = vector.load %arg4[%c0_4, %c0_5] : memref<32x96xbf16, #tpu.memory_space<vmem>>, vector<32x96xbf16>
    %cst = arith.constant dense<0.000000e+00> : vector<16x96xf32>
    %7 = tpu.matmul %5, %6, %cst {dimension_numbers = #tpu.dot_dimension_numbers<[1], [0], [0], [1], [0, 0, 1, 1], [], []>} : vector<16x32xbf16>, vector<32x96xbf16>, vector<16x96xf32> -> vector<16x96xf32>
    %8 = arith.addf %3, %7 : vector<16x96xf32>
    %c0_6 = arith.constant 0 : index
    %c0_7 = arith.constant 0 : index
    %9 = vector.load %arg7[%c0_6, %c0_7] : memref<16x96xf32, #tpu.memory_space<vmem>>, vector<16x96xf32>
    tpu.vector_store %arg7[%c0_6, %c0_7], %8 {strides = array<i32>} : memref<16x96xf32, #tpu.memory_space<vmem>>, vector<16x96xf32>,
    %c0_i32_8 = arith.constant 0 : i32
    %10 = arith.cmpi eq, %arg2, %c0_i32_8 : i32
    %11 = arith.extui %10 : i1 to i32
    %c0_i32_9 = arith.constant 0 : i32
    %12 = arith.cmpi ne, %11, %c0_i32_9 : i32
    scf.if %12 {
      %c0_10 = arith.constant 0 : index
      %c0_11 = arith.constant 0 : index
      %13 = vector.load %arg7[%c0_10, %c0_11] : memref<16x96xf32, #tpu.memory_space<vmem>>, vector<16x96xf32>
      %c0_12 = arith.constant 0 : index
      %c0_13 = arith.constant 0 : index
      %14 = vector.load %arg5[%c0_12, %c0_13] : memref<1x96xf32, #tpu.memory_space<vmem>>, vector<1x96xf32>
      %15 = vector.broadcast %14 : vector<1x96xf32> to vector<16x96xf32>
      %16 = arith.addf %13, %15 : vector<16x96xf32>
      %c0_14 = arith.constant 0 : index
      %c0_15 = arith.constant 0 : index
      %17 = vector.load %arg6[%c0_14, %c0_15] : memref<16x96xf32, #tpu.memory_space<vmem>>, vector<16x96xf32>
      tpu.vector_store %arg6[%c0_14, %c0_15], %16 {strides = array<i32>} : memref<16x96xf32, #tpu.memory_space<vmem>>, vector<16x96xf32>,
    } else {
    }
    return
  }
  func.func @transform_0(%arg0: i32, %arg1: i32, %arg2: i32) -> (i32, i32) {
    %c0_i32 = arith.constant 0 : i32
    return %arg0, %arg2 : i32, i32
  }
  func.func @transform_1(%arg0: i32, %arg1: i32, %arg2: i32) -> (i32, i32) {
    %c0_i32 = arith.constant 0 : i32
    return %arg2, %arg1 : i32, i32
  }
  func.func @transform_2(%arg0: i32, %arg1: i32, %arg2: i32) -> (i32, i32) {
    %c0_i32 = arith.constant 0 : i32
    %c0_i32_0 = arith.constant 0 : i32
    return %c0_i32, %arg1 : i32, i32
  }
  func.func @transform_3(%arg0: i32, %arg1: i32, %arg2: i32) -> (i32, i32) {
    %c0_i32 = arith.constant 0 : i32
    return %arg0, %arg1 : i32, i32
  }
}

module attributes {stable_mosaic.version = 11 : i64} {
  func.func @_linear_kernel(%arg0: i32, %arg1: i32, %arg2: i32, %arg3: memref<16x32xf32, #tpu.memory_space<vmem>>, %arg4: memref<32x32xbf16, #tpu.memory_space<vmem>>, %arg5: memref<1x32xf32, #tpu.memory_space<vmem>>, %arg6: memref<16x32xf32, #tpu.memory_space<vmem>>, %arg7: memref<16x32xf32, #tpu.memory_space<vmem>>, %arg8: memref<16x32xf32, #tpu.memory_space<vmem>>) attributes {dimension_semantics = [#tpu.dimension_semantics<parallel>, #tpu.dimension_semantics<parallel>, #tpu.dimension_semantics<arbitrary>], iteration_bounds = array<i64: 1, 1, 1>, scalar_prefetch = 0 : i64, scratch_operands = 1 : i64, tpu.core_type = #tpu.core_type<tc>, window_params = [{transform_indices = @transform_0, window_bounds = array<i64: 16, 32>}, {transform_indices = @transform_1, window_bounds = array<i64: 32, 32>}, {transform_indices = @transform_2, window_bounds = array<i64: 1, 32>}, {transform_indices = @transform_3, window_bounds = array<i64: 16, 32>}, {transform_indices = @transform_4, window_bounds = array<i64: 16, 32>}]} {
    %c0_i32 = arith.constant 0 : i32
    %0 = arith.cmpi eq, %arg2, %c0_i32 : i32
    %1 = arith.extui %0 : i1 to i32
    %c0_i32_0 = arith.constant 0 : i32
    %2 = arith.cmpi ne, %1, %c0_i32_0 : i32
    scf.if %2 {
      %cst_10 = arith.constant 0.000000e+00 : f32
      %13 = vector.broadcast %cst_10 : f32 to vector<16x32xf32>
      %c0_11 = arith.constant 0 : index
      %c0_12 = arith.constant 0 : index
      %14 = vector.load %arg8[%c0_11, %c0_12] : memref<16x32xf32, #tpu.memory_space<vmem>>, vector<16x32xf32>
      tpu.vector_store %arg8[%c0_11, %c0_12], %13 {strides = array<i32>} : memref<16x32xf32, #tpu.memory_space<vmem>>, vector<16x32xf32>,
    } else {
    }
    %c0 = arith.constant 0 : index
    %c0_1 = arith.constant 0 : index
    %3 = vector.load %arg8[%c0, %c0_1] : memref<16x32xf32, #tpu.memory_space<vmem>>, vector<16x32xf32>
    %c0_2 = arith.constant 0 : index
    %c0_3 = arith.constant 0 : index
    %4 = vector.load %arg3[%c0_2, %c0_3] : memref<16x32xf32, #tpu.memory_space<vmem>>, vector<16x32xf32>
    %5 = arith.truncf %4 : vector<16x32xf32> to vector<16x32xbf16>
    %c0_4 = arith.constant 0 : index
    %c0_5 = arith.constant 0 : index
    %6 = vector.load %arg4[%c0_4, %c0_5] : memref<32x32xbf16, #tpu.memory_space<vmem>>, vector<32x32xbf16>
    %cst = arith.constant dense<0.000000e+00> : vector<16x32xf32>
    %7 = tpu.matmul %5, %6, %cst {dimension_numbers = #tpu.dot_dimension_numbers<[1], [0], [0], [1], [0, 0, 1, 1], [], []>} : vector<16x32xbf16>, vector<32x32xbf16>, vector<16x32xf32> -> vector<16x32xf32>
    %8 = arith.addf %3, %7 : vector<16x32xf32>
    %c0_6 = arith.constant 0 : index
    %c0_7 = arith.constant 0 : index
    %9 = vector.load %arg8[%c0_6, %c0_7] : memref<16x32xf32, #tpu.memory_space<vmem>>, vector<16x32xf32>
    tpu.vector_store %arg8[%c0_6, %c0_7], %8 {strides = array<i32>} : memref<16x32xf32, #tpu.memory_space<vmem>>, vector<16x32xf32>,
    %c0_i32_8 = arith.constant 0 : i32
    %10 = arith.cmpi eq, %arg2, %c0_i32_8 : i32
    %11 = arith.extui %10 : i1 to i32
    %c0_i32_9 = arith.constant 0 : i32
    %12 = arith.cmpi ne, %11, %c0_i32_9 : i32
    scf.if %12 {
      %c0_10 = arith.constant 0 : index
      %c0_11 = arith.constant 0 : index
      %13 = vector.load %arg8[%c0_10, %c0_11] : memref<16x32xf32, #tpu.memory_space<vmem>>, vector<16x32xf32>
      %c0_12 = arith.constant 0 : index
      %c0_13 = arith.constant 0 : index
      %14 = vector.load %arg5[%c0_12, %c0_13] : memref<1x32xf32, #tpu.memory_space<vmem>>, vector<1x32xf32>
      %15 = vector.broadcast %14 : vector<1x32xf32> to vector<16x32xf32>
      %16 = arith.addf %13, %15 : vector<16x32xf32>
      %c0_14 = arith.constant 0 : index
      %c0_15 = arith.constant 0 : index
      %17 = vector.load %arg6[%c0_14, %c0_15] : memref<16x32xf32, #tpu.memory_space<vmem>>, vector<16x32xf32>
      %18 = arith.addf %16, %17 : vector<16x32xf32>
      %c0_16 = arith.constant 0 : index
      %c0_17 = arith.constant 0 : index
      %19 = vector.load %arg7[%c0_16, %c0_17] : memref<16x32xf32, #tpu.memory_space<vmem>>, vector<16x32xf32>
      tpu.vector_store %arg7[%c0_16, %c0_17], %18 {strides = array<i32>} : memref<16x32xf32, #tpu.memory_space<vmem>>, vector<16x32xf32>,
    } else {
    }
    return
  }
  func.func @transform_0(%arg0: i32, %arg1: i32, %arg2: i32) -> (i32, i32) {
    %c0_i32 = arith.constant 0 : i32
    return %arg0, %arg2 : i32, i32
  }
  func.func @transform_1(%arg0: i32, %arg1: i32, %arg2: i32) -> (i32, i32) {
    %c0_i32 = arith.constant 0 : i32
    return %arg2, %arg1 : i32, i32
  }
  func.func @transform_2(%arg0: i32, %arg1: i32, %arg2: i32) -> (i32, i32) {
    %c0_i32 = arith.constant 0 : i32
    %c0_i32_0 = arith.constant 0 : i32
    return %c0_i32, %arg1 : i32, i32
  }
  func.func @transform_3(%arg0: i32, %arg1: i32, %arg2: i32) -> (i32, i32) {
    %c0_i32 = arith.constant 0 : i32
    return %arg0, %arg1 : i32, i32
  }
  func.func @transform_4(%arg0: i32, %arg1: i32, %arg2: i32) -> (i32, i32) {
    %c0_i32 = arith.constant 0 : i32
    return %arg0, %arg1 : i32, i32
  }
}

module attributes {stable_mosaic.version = 11 : i64} {
  func.func @_linear_kernel(%arg0: i32, %arg1: i32, %arg2: i32, %arg3: memref<16x32xf32, #tpu.memory_space<vmem>>, %arg4: memref<32x128xbf16, #tpu.memory_space<vmem>>, %arg5: memref<1x128xf32, #tpu.memory_space<vmem>>, %arg6: memref<16x128xf32, #tpu.memory_space<vmem>>, %arg7: memref<16x128xf32, #tpu.memory_space<vmem>>) attributes {dimension_semantics = [#tpu.dimension_semantics<parallel>, #tpu.dimension_semantics<parallel>, #tpu.dimension_semantics<arbitrary>], iteration_bounds = array<i64: 1, 1, 1>, scalar_prefetch = 0 : i64, scratch_operands = 1 : i64, tpu.core_type = #tpu.core_type<tc>, window_params = [{transform_indices = @transform_0, window_bounds = array<i64: 16, 32>}, {transform_indices = @transform_1, window_bounds = array<i64: 32, 128>}, {transform_indices = @transform_2, window_bounds = array<i64: 1, 128>}, {transform_indices = @transform_3, window_bounds = array<i64: 16, 128>}]} {
    %c0_i32 = arith.constant 0 : i32
    %0 = arith.cmpi eq, %arg2, %c0_i32 : i32
    %1 = arith.extui %0 : i1 to i32
    %c0_i32_0 = arith.constant 0 : i32
    %2 = arith.cmpi ne, %1, %c0_i32_0 : i32
    scf.if %2 {
      %cst_10 = arith.constant 0.000000e+00 : f32
      %13 = vector.broadcast %cst_10 : f32 to vector<16x128xf32>
      %c0_11 = arith.constant 0 : index
      %c0_12 = arith.constant 0 : index
      %14 = vector.load %arg7[%c0_11, %c0_12] : memref<16x128xf32, #tpu.memory_space<vmem>>, vector<16x128xf32>
      tpu.vector_store %arg7[%c0_11, %c0_12], %13 {strides = array<i32>} : memref<16x128xf32, #tpu.memory_space<vmem>>, vector<16x128xf32>,
    } else {
    }
    %c0 = arith.constant 0 : index
    %c0_1 = arith.constant 0 : index
    %3 = vector.load %arg7[%c0, %c0_1] : memref<16x128xf32, #tpu.memory_space<vmem>>, vector<16x128xf32>
    %c0_2 = arith.constant 0 : index
    %c0_3 = arith.constant 0 : index
    %4 = vector.load %arg3[%c0_2, %c0_3] : memref<16x32xf32, #tpu.memory_space<vmem>>, vector<16x32xf32>
    %5 = arith.truncf %4 : vector<16x32xf32> to vector<16x32xbf16>
    %c0_4 = arith.constant 0 : index
    %c0_5 = arith.constant 0 : index
    %6 = vector.load %arg4[%c0_4, %c0_5] : memref<32x128xbf16, #tpu.memory_space<vmem>>, vector<32x128xbf16>
    %cst = arith.constant dense<0.000000e+00> : vector<16x128xf32>
    %7 = tpu.matmul %5, %6, %cst {dimension_numbers = #tpu.dot_dimension_numbers<[1], [0], [0], [1], [0, 0, 1, 1], [], []>} : vector<16x32xbf16>, vector<32x128xbf16>, vector<16x128xf32> -> vector<16x128xf32>
    %8 = arith.addf %3, %7 : vector<16x128xf32>
    %c0_6 = arith.constant 0 : index
    %c0_7 = arith.constant 0 : index
    %9 = vector.load %arg7[%c0_6, %c0_7] : memref<16x128xf32, #tpu.memory_space<vmem>>, vector<16x128xf32>
    tpu.vector_store %arg7[%c0_6, %c0_7], %8 {strides = array<i32>} : memref<16x128xf32, #tpu.memory_space<vmem>>, vector<16x128xf32>,
    %c0_i32_8 = arith.constant 0 : i32
    %10 = arith.cmpi eq, %arg2, %c0_i32_8 : i32
    %11 = arith.extui %10 : i1 to i32
    %c0_i32_9 = arith.constant 0 : i32
    %12 = arith.cmpi ne, %11, %c0_i32_9 : i32
    scf.if %12 {
      %c0_10 = arith.constant 0 : index
      %c0_11 = arith.constant 0 : index
      %13 = vector.load %arg7[%c0_10, %c0_11] : memref<16x128xf32, #tpu.memory_space<vmem>>, vector<16x128xf32>
      %c0_12 = arith.constant 0 : index
      %c0_13 = arith.constant 0 : index
      %14 = vector.load %arg5[%c0_12, %c0_13] : memref<1x128xf32, #tpu.memory_space<vmem>>, vector<1x128xf32>
      %15 = vector.broadcast %14 : vector<1x128xf32> to vector<16x128xf32>
      %16 = arith.addf %13, %15 : vector<16x128xf32>
      %cst_14 = arith.constant 0.000000e+00 : f32
      %17 = vector.broadcast %cst_14 : f32 to vector<16x128xf32>
      %18 = arith.maximumf %16, %17 : vector<16x128xf32>
      %c0_15 = arith.constant 0 : index
      %c0_16 = arith.constant 0 : index
      %19 = vector.load %arg6[%c0_15, %c0_16] : memref<16x128xf32, #tpu.memory_space<vmem>>, vector<16x128xf32>
      tpu.vector_store %arg6[%c0_15, %c0_16], %18 {strides = array<i32>} : memref<16x128xf32, #tpu.memory_space<vmem>>, vector<16x128xf32>,
    } else {
    }
    return
  }
  func.func @transform_0(%arg0: i32, %arg1: i32, %arg2: i32) -> (i32, i32) {
    %c0_i32 = arith.constant 0 : i32
    return %arg0, %arg2 : i32, i32
  }
  func.func @transform_1(%arg0: i32, %arg1: i32, %arg2: i32) -> (i32, i32) {
    %c0_i32 = arith.constant 0 : i32
    return %arg2, %arg1 : i32, i32
  }
  func.func @transform_2(%arg0: i32, %arg1: i32, %arg2: i32) -> (i32, i32) {
    %c0_i32 = arith.constant 0 : i32
    %c0_i32_0 = arith.constant 0 : i32
    return %c0_i32, %arg1 : i32, i32
  }
  func.func @transform_3(%arg0: i32, %arg1: i32, %arg2: i32) -> (i32, i32) {
    %c0_i32 = arith.constant 0 : i32
    return %arg0, %arg1 : i32, i32
  }
}

module attributes {stable_mosaic.version = 11 : i64} {
  func.func @_layernorm_kernel(%arg0: i32, %arg1: memref<16x32xf32, #tpu.memory_space<vmem>>, %arg2: memref<1x32xf32, #tpu.memory_space<vmem>>, %arg3: memref<1x32xf32, #tpu.memory_space<vmem>>, %arg4: memref<16x32xf32, #tpu.memory_space<vmem>>) attributes {dimension_semantics = [#tpu.dimension_semantics<parallel>], iteration_bounds = array<i64: 1>, scalar_prefetch = 0 : i64, scratch_operands = 0 : i64, tpu.core_type = #tpu.core_type<tc>, window_params = [{transform_indices = @transform_0, window_bounds = array<i64: 16, 32>}, {pipeline_mode = #tpu.pipeline_mode<synchronous>, transform_indices = @transform_1, window_bounds = array<i64: 1, 32>}, {pipeline_mode = #tpu.pipeline_mode<synchronous>, transform_indices = @transform_2, window_bounds = array<i64: 1, 32>}, {transform_indices = @transform_3, window_bounds = array<i64: 16, 32>}]} {
    %c0 = arith.constant 0 : index
    %c0_0 = arith.constant 0 : index
    %0 = vector.load %arg1[%c0, %c0_0] : memref<16x32xf32, #tpu.memory_space<vmem>>, vector<16x32xf32>
    %cst = arith.constant dense<0.000000e+00> : vector<16xf32>
    %1 = vector.multi_reduction <add>, %0, %cst [1] : vector<16x32xf32> to vector<16xf32>
    %2 = vector.shape_cast %1 : vector<16xf32> to vector<16x1xf32>
    %cst_1 = arith.constant 3.200000e+01 : f32
    %3 = vector.broadcast %cst_1 : f32 to vector<16x1xf32>
    %4 = arith.divf %2, %3 : vector<16x1xf32>
    %5 = vector.broadcast %4 : vector<16x1xf32> to vector<16x32xf32>
    %6 = arith.subf %0, %5 : vector<16x32xf32>
    %7 = arith.mulf %6, %6 : vector<16x32xf32>
    %cst_2 = arith.constant dense<0.000000e+00> : vector<16xf32>
    %8 = vector.multi_reduction <add>, %7, %cst_2 [1] : vector<16x32xf32> to vector<16xf32>
    %9 = vector.shape_cast %8 : vector<16xf32> to vector<16x1xf32>
    %cst_3 = arith.constant 0.0322580636 : f32
    %10 = vector.broadcast %cst_3 : f32 to vector<16x1xf32>
    %11 = arith.mulf %9, %10 : vector<16x1xf32>
    %c0_4 = arith.constant 0 : index
    %c0_5 = arith.constant 0 : index
    %12 = vector.load %arg2[%c0_4, %c0_5] : memref<1x32xf32, #tpu.memory_space<vmem>>, vector<1x32xf32>
    %13 = vector.broadcast %12 : vector<1x32xf32> to vector<16x32xf32>
    %14 = arith.mulf %13, %6 : vector<16x32xf32>
    %15 = math.sqrt %11 : vector<16x1xf32>
    %cst_6 = arith.constant 9.99999997E-7 : f32
    %16 = vector.broadcast %cst_6 : f32 to vector<16x1xf32>
    %17 = arith.addf %15, %16 : vector<16x1xf32>
    %18 = vector.broadcast %17 : vector<16x1xf32> to vector<16x32xf32>
    %19 = arith.divf %14, %18 : vector<16x32xf32>
    %c0_7 = arith.constant 0 : index
    %c0_8 = arith.constant 0 : index
    %20 = vector.load %arg3[%c0_7, %c0_8] : memref<1x32xf32, #tpu.memory_space<vmem>>, vector<1x32xf32>
    %21 = vector.broadcast %20 : vector<1x32xf32> to vector<16x32xf32>
    %22 = arith.addf %19, %21 : vector<16x32xf32>
    %c0_9 = arith.constant 0 : index
    %c0_10 = arith.constant 0 : index
    %23 = vector.load %arg4[%c0_9, %c0_10] : memref<16x32xf32, #tpu.memory_space<vmem>>, vector<16x32xf32>
    tpu.vector_store %arg4[%c0_9, %c0_10], %22 {strides = array<i32>} : memref<16x32xf32, #tpu.memory_space<vmem>>, vector<16x32xf32>,
    return
  }
  func.func @transform_0(%arg0: i32) -> (i32, i32) {
    %c0_i32 = arith.constant 0 : i32
    %c0_i32_0 = arith.constant 0 : i32
    return %arg0, %c0_i32 : i32, i32
  }
  func.func @transform_1(%arg0: i32) -> (i32, i32) {
    %c0_i32 = arith.constant 0 : i32
    %c0_i32_0 = arith.constant 0 : i32
    %c0_i32_1 = arith.constant 0 : i32
    return %c0_i32, %c0_i32_0 : i32, i32
  }
  func.func @transform_2(%arg0: i32) -> (i32, i32) {
    %c0_i32 = arith.constant 0 : i32
    %c0_i32_0 = arith.constant 0 : i32
    %c0_i32_1 = arith.constant 0 : i32
    return %c0_i32, %c0_i32_0 : i32, i32
  }
  func.func @transform_3(%arg0: i32) -> (i32, i32) {
    %c0_i32 = arith.constant 0 : i32
    %c0_i32_0 = arith.constant 0 : i32
    return %arg0, %c0_i32 : i32, i32
  }
}

module attributes {stable_mosaic.version = 11 : i64} {
  func.func @_linear_kernel(%arg0: i32, %arg1: i32, %arg2: i32, %arg3: memref<16x128xf32, #tpu.memory_space<vmem>>, %arg4: memref<128x32xbf16, #tpu.memory_space<vmem>>, %arg5: memref<1x32xf32, #tpu.memory_space<vmem>>, %arg6: memref<16x32xf32, #tpu.memory_space<vmem>>, %arg7: memref<16x32xf32, #tpu.memory_space<vmem>>, %arg8: memref<16x32xf32, #tpu.memory_space<vmem>>) attributes {dimension_semantics = [#tpu.dimension_semantics<parallel>, #tpu.dimension_semantics<parallel>, #tpu.dimension_semantics<arbitrary>], iteration_bounds = array<i64: 1, 1, 1>, scalar_prefetch = 0 : i64, scratch_operands = 1 : i64, tpu.core_type = #tpu.core_type<tc>, window_params = [{transform_indices = @transform_0, window_bounds = array<i64: 16, 128>}, {transform_indices = @transform_1, window_bounds = array<i64: 128, 32>}, {transform_indices = @transform_2, window_bounds = array<i64: 1, 32>}, {transform_indices = @transform_3, window_bounds = array<i64: 16, 32>}, {transform_indices = @transform_4, window_bounds = array<i64: 16, 32>}]} {
    %c0_i32 = arith.constant 0 : i32
    %0 = arith.cmpi eq, %arg2, %c0_i32 : i32
    %1 = arith.extui %0 : i1 to i32
    %c0_i32_0 = arith.constant 0 : i32
    %2 = arith.cmpi ne, %1, %c0_i32_0 : i32
    scf.if %2 {
      %cst_10 = arith.constant 0.000000e+00 : f32
      %13 = vector.broadcast %cst_10 : f32 to vector<16x32xf32>
      %c0_11 = arith.constant 0 : index
      %c0_12 = arith.constant 0 : index
      %14 = vector.load %arg8[%c0_11, %c0_12] : memref<16x32xf32, #tpu.memory_space<vmem>>, vector<16x32xf32>
      tpu.vector_store %arg8[%c0_11, %c0_12], %13 {strides = array<i32>} : memref<16x32xf32, #tpu.memory_space<vmem>>, vector<16x32xf32>,
    } else {
    }
    %c0 = arith.constant 0 : index
    %c0_1 = arith.constant 0 : index
    %3 = vector.load %arg8[%c0, %c0_1] : memref<16x32xf32, #tpu.memory_space<vmem>>, vector<16x32xf32>
    %c0_2 = arith.constant 0 : index
    %c0_3 = arith.constant 0 : index
    %4 = vector.load %arg3[%c0_2, %c0_3] : memref<16x128xf32, #tpu.memory_space<vmem>>, vector<16x128xf32>
    %5 = arith.truncf %4 : vector<16x128xf32> to vector<16x128xbf16>
    %c0_4 = arith.constant 0 : index
    %c0_5 = arith.constant 0 : index
    %6 = vector.load %arg4[%c0_4, %c0_5] : memref<128x32xbf16, #tpu.memory_space<vmem>>, vector<128x32xbf16>
    %cst = arith.constant dense<0.000000e+00> : vector<16x32xf32>
    %7 = tpu.matmul %5, %6, %cst {dimension_numbers = #tpu.dot_dimension_numbers<[1], [0], [0], [1], [0, 0, 1, 1], [], []>} : vector<16x128xbf16>, vector<128x32xbf16>, vector<16x32xf32> -> vector<16x32xf32>
    %8 = arith.addf %3, %7 : vector<16x32xf32>
    %c0_6 = arith.constant 0 : index
    %c0_7 = arith.constant 0 : index
    %9 = vector.load %arg8[%c0_6, %c0_7] : memref<16x32xf32, #tpu.memory_space<vmem>>, vector<16x32xf32>
    tpu.vector_store %arg8[%c0_6, %c0_7], %8 {strides = array<i32>} : memref<16x32xf32, #tpu.memory_space<vmem>>, vector<16x32xf32>,
    %c0_i32_8 = arith.constant 0 : i32
    %10 = arith.cmpi eq, %arg2, %c0_i32_8 : i32
    %11 = arith.extui %10 : i1 to i32
    %c0_i32_9 = arith.constant 0 : i32
    %12 = arith.cmpi ne, %11, %c0_i32_9 : i32
    scf.if %12 {
      %c0_10 = arith.constant 0 : index
      %c0_11 = arith.constant 0 : index
      %13 = vector.load %arg8[%c0_10, %c0_11] : memref<16x32xf32, #tpu.memory_space<vmem>>, vector<16x32xf32>
      %c0_12 = arith.constant 0 : index
      %c0_13 = arith.constant 0 : index
      %14 = vector.load %arg5[%c0_12, %c0_13] : memref<1x32xf32, #tpu.memory_space<vmem>>, vector<1x32xf32>
      %15 = vector.broadcast %14 : vector<1x32xf32> to vector<16x32xf32>
      %16 = arith.addf %13, %15 : vector<16x32xf32>
      %c0_14 = arith.constant 0 : index
      %c0_15 = arith.constant 0 : index
      %17 = vector.load %arg6[%c0_14, %c0_15] : memref<16x32xf32, #tpu.memory_space<vmem>>, vector<16x32xf32>
      %18 = arith.addf %16, %17 : vector<16x32xf32>
      %c0_16 = arith.constant 0 : index
      %c0_17 = arith.constant 0 : index
      %19 = vector.load %arg7[%c0_16, %c0_17] : memref<16x32xf32, #tpu.memory_space<vmem>>, vector<16x32xf32>
      tpu.vector_store %arg7[%c0_16, %c0_17], %18 {strides = array<i32>} : memref<16x32xf32, #tpu.memory_space<vmem>>, vector<16x32xf32>,
    } else {
    }
    return
  }
  func.func @transform_0(%arg0: i32, %arg1: i32, %arg2: i32) -> (i32, i32) {
    %c0_i32 = arith.constant 0 : i32
    return %arg0, %arg2 : i32, i32
  }
  func.func @transform_1(%arg0: i32, %arg1: i32, %arg2: i32) -> (i32, i32) {
    %c0_i32 = arith.constant 0 : i32
    return %arg2, %arg1 : i32, i32
  }
  func.func @transform_2(%arg0: i32, %arg1: i32, %arg2: i32) -> (i32, i32) {
    %c0_i32 = arith.constant 0 : i32
    %c0_i32_0 = arith.constant 0 : i32
    return %c0_i32, %arg1 : i32, i32
  }
  func.func @transform_3(%arg0: i32, %arg1: i32, %arg2: i32) -> (i32, i32) {
    %c0_i32 = arith.constant 0 : i32
    return %arg0, %arg1 : i32, i32
  }
  func.func @transform_4(%arg0: i32, %arg1: i32, %arg2: i32) -> (i32, i32) {
    %c0_i32 = arith.constant 0 : i32
    return %arg0, %arg1 : i32, i32
  }
}

</mosaic_0001>

<llo_original>
// kernel: encoder_layer.8
$region0: #{encoder_layer.8}
  #allocation0 [shape = 'u32[]', space=smem, size = 0x4, offset = 0x4, fixed_abs, tag = 'smem constant byte address 0x4 - core index']
  #allocation1 [shape = 'u32[72,128]{1,0:T(1,128)}', space=vmem, size = 0x9000, scoped, tag = 'internal scratch']
  #allocation2 [shape = 'f32[16,96]{1,0:T(8,128)}', space=vmem, size = 0x2000, scoped, tag = 'scratch operand']
  %s0 = inlined_call_operand.vmem [shape: f32[16,32], index: 0, kind: input, shape index: {}]
  %s1 = inlined_call_operand.hbm [shape: bf16[32,96], index: 1, kind: input, shape index: {}]
  %s2 = inlined_call_operand.vmem [shape: f32[1,96], index: 2, kind: input, shape index: {}]
  %s3 = inlined_call_operand.vmem [shape: f32[16,96], index: 3, kind: output, shape index: {}]
  %s4 = sld [smem:[#allocation0]]
  $region34: #{encoder_layer.8} parent=0
    _
  %s6 = ssub.s32 1, %s4
  %s7 = scalar_select 0, %s6, %s4
  $region1: #{encoder_layer.8} parent=0
    #allocation3 [shape = 'u8[8192]{0}', space=vmem, size = 0x2000, scoped, tag = 'input window, operand 1, single buffered']
    #allocation4 [shape = 's32[1]{0}', space=sflag, size = 0x4, scoped, tag = 'scoped memory for encoder_layer.8']
    %8 = vsyncpa [#allocation4], 0
    // Predicated region
    $region2: #{encoder_layer.8} parent=1 // pred_check
      _
    $region3: #{encoder_layer.8} parent=1 // pred_check_branch
      %10 = sbr.rel (0) target = $region5
    $region4: #{encoder_layer.8} parent=1 // pred_region
      _
    $region5: #{encoder_layer.8} parent=1 // pred_fallthru
      _
    // Predicated region
    $region6: #{encoder_layer.8} parent=1 // pred_check
      _
    $region7: #{encoder_layer.8} parent=1 // pred_check_branch
      %12 = sbr.rel (0) target = $region9
    $region8: #{encoder_layer.8} parent=1 // pred_region
      %14 = vsyncadd [#allocation4], 0
      %s15 = sshll.u32 %s1, 4
      %s16 = int_to_ptr.hbm [resolvable:$true] %s15
      %s17 = sshll.u32 [#allocation3], 4
      %s18 = int_to_ptr.vmem [resolvable:$true] %s17
      %23 = dma.hbm_to_vmem [thread:$0]  %s16, 256, %s18, [#allocation4], 64, 64, 4
    $region9: #{encoder_layer.8} parent=1 // pred_fallthru
      _
    // Predicated region
    $region10: #{encoder_layer.8} parent=1 // pred_check
      _
    $region11: #{encoder_layer.8} parent=1 // pred_check_branch
      %25 = sbr.rel (0) target = $region13
    $region12: #{encoder_layer.8} parent=1 // pred_region
      _
    $region13: #{encoder_layer.8} parent=1 // pred_fallthru
      _
    // Predicated region
    $region14: #{encoder_layer.8} parent=1 // pred_check
      _
    $region15: #{encoder_layer.8} parent=1 // pred_check_branch
      %27 = sbr.rel (0) target = $region17
    $region16: #{encoder_layer.8} parent=1 // pred_region
      %29 = dma.done [#allocation4], 256
    $region17: #{encoder_layer.8} parent=1 // pred_fallthru
      _
    %p31 = scmp.eq.s32.totalorder 0, 0
    // Predicated region
    $region18: #{encoder_layer.8} parent=1 // pred_check
      %p32 = pneg %p31
    $region19: #{encoder_layer.8} parent=1 // pred_check_branch
      %34 = sbr.rel (%p32) target = $region21
    $region20: #{encoder_layer.8} parent=1 // pred_region
      %vm35 = vcmask 785408
      %36 = vst.msk [vmem:[#allocation2] sm:$0xff] %vm35, 0.0
      %37 = vst.msk [vmem:[#allocation2 + $0x8] sm:$0xff] %vm35, 0.0
    $region21: #{encoder_layer.8} parent=1 // pred_fallthru
      _
    %v38 = vld [vmem:[#allocation2] sm:$0xff]
    %v39 = vld [vmem:[#allocation2 + $0x8] sm:$0xff]
    %v40 = vld [vmem:[%s0] sm:$0xff]
    %v41 = vld [vmem:[%s0 + $0x8] sm:$0xff]
    %v42 = vpack.c.bf16 %v41, %v40
    %v43 = vld [vmem:[#allocation3] sm:$0xf]
    %v44 = vld [vmem:[#allocation3 + $0x4] sm:$0xf]
    %v45 = vld [vmem:[#allocation3 + $0x8] sm:$0xf]
    %v46 = vld [vmem:[#allocation3 + $0xc] sm:$0xf]
    %v51 = vunpack.c.l.b16 %v43
    %v52 = vunpack.c.l.b16 %v44
    %v53 = vunpack.c.l.b16 %v45
    %v54 = vunpack.c.l.b16 %v46
    %v55 = vpack.c.b16 %v52, %v51
    %v56 = vpack.c.b16 %v54, %v53
    %vm59 = vcmask 261120
    %v61 = vsel %vm59, %v42, 0
    %63 = vmatpush.bf16.msra.mxu0 0
    %64 = vmatpush.bf16.msra.mxu0 0
    %65 = vmatpush.bf16.msra.mxu0 0
    %66 = vmatpush.bf16.msra.mxu0 0
    %67 = vmatpush.bf16.msra.mxu0 0
    %68 = vmatpush.bf16.msra.mxu0 0
    %69 = vmatpush.bf16.msra.mxu0 %v56
    %70 = vmatpush.bf16.msra.mxu0 %v55
    %71 = vmatmul.bf16.gmra.mxu0 %v61
    %v72 = vpop.f32.mrf.mxu0
    %v73 = vadd.f32 0.0, %v72
    %v74 = vpop.f32.mrf.mxu0
    %v75 = vadd.f32 0.0, %v74
    %76 = vdwg.mxu0
    %v77 = vadd.f32 %v38, %v73
    %v78 = vadd.f32 %v39, %v75
    %vm79 = vcmask 785408
    %80 = vst.msk [vmem:[#allocation2] sm:$0xff] %vm79, %v77
    %81 = vst.msk [vmem:[#allocation2 + $0x8] sm:$0xff] %vm79, %v78
    // Predicated region
    $region22: #{encoder_layer.8} parent=1 // pred_check
      %p82 = pneg %p31
    $region23: #{encoder_layer.8} parent=1 // pred_check_branch
      %84 = sbr.rel (%p82) target = $region25
    $region24: #{encoder_layer.8} parent=1 // pred_region
      %v85 = vld [vmem:[#allocation2] sm:$0xff]
      %v86 = vld [vmem:[#allocation2 + $0x8] sm:$0xff]
      %v87 = vld [vmem:[%s2] sm:$0x1]
      %v89 = vperm.slane %v87, 0
      %v91 = vadd.f32 %v85, %v89
      %v92 = vadd.f32 %v86, %v89
      %93 = vst.msk [vmem:[%s3] sm:$0xff] %vm79, %v91
      %94 = vst.msk [vmem:[%s3 + $0x8] sm:$0xff] %vm79, %v92
    $region25: #{encoder_layer.8} parent=1 // pred_fallthru
      _
    // Predicated region
    $region26: #{encoder_layer.8} parent=1 // pred_check
      _
    $region27: #{encoder_layer.8} parent=1 // pred_check_branch
      %96 = sbr.rel (0) target = $region29
    $region28: #{encoder_layer.8} parent=1 // pred_region
      _
    $region29: #{encoder_layer.8} parent=1 // pred_fallthru
      _
    // Predicated region
    $region30: #{encoder_layer.8} parent=1 // pred_check
      _
    $region31: #{encoder_layer.8} parent=1 // pred_check_branch
      %98 = sbr.rel (0) target = $region33
    $region32: #{encoder_layer.8} parent=1 // pred_region
      _
    $region33: #{encoder_layer.8} parent=1 // pred_fallthru
      _
    %99 = vsyncpa [#allocation4], 1

// kernel: encoder_layer.7
$region0: #{encoder_layer.7}
  #allocation0 [shape = 'u32[]', space=smem, size = 0x4, offset = 0x4, fixed_abs, tag = 'smem constant byte address 0x4 - core index']
  #allocation1 [shape = 'u32[72,128]{1,0:T(1,128)}', space=vmem, size = 0x9000, scoped, tag = 'internal scratch']
  %s0 = inlined_call_operand.hbm [shape: f32[16,32], index: 0, kind: input, shape index: {}]
  %s1 = inlined_call_operand.vmem [shape: f32[1,32], index: 1, kind: input, shape index: {}]
  %s2 = inlined_call_operand.vmem [shape: f32[1,32], index: 2, kind: input, shape index: {}]
  %s3 = inlined_call_operand.vmem [shape: f32[16,32], index: 3, kind: output, shape index: {}]
  %s4 = sld [smem:[#allocation0]]
  $region26: #{encoder_layer.7} parent=0
    _
  %s6 = ssub.s32 1, %s4
  %s7 = scalar_select 0, %s6, %s4
  $region1: #{encoder_layer.7} parent=0
    #allocation2 [shape = 'u8[8192]{0}', space=vmem, size = 0x2000, scoped, tag = 'input window, operand 0, single buffered']
    #allocation3 [shape = 's32[1]{0}', space=sflag, size = 0x4, scoped, tag = 'scoped memory for encoder_layer.7']
    %8 = vsyncpa [#allocation3], 0
    // Predicated region
    $region2: #{encoder_layer.7} parent=1 // pred_check
      _
    $region3: #{encoder_layer.7} parent=1 // pred_check_branch
      %10 = sbr.rel (0) target = $region5
    $region4: #{encoder_layer.7} parent=1 // pred_region
      %12 = vsyncadd [#allocation3], 0
      %s13 = sshll.u32 %s0, 4
      %s14 = int_to_ptr.hbm [resolvable:$true] %s13
      %s15 = sshll.u32 [#allocation2], 4
      %s16 = int_to_ptr.vmem [resolvable:$true] %s15
      %21 = dma.hbm_to_vmem [thread:$0]  %s14, 256, %s16, [#allocation3], 128, 128, 8
    $region5: #{encoder_layer.7} parent=1 // pred_fallthru
      _
    // Predicated region
    $region6: #{encoder_layer.7} parent=1 // pred_check
      _
    $region7: #{encoder_layer.7} parent=1 // pred_check_branch
      %23 = sbr.rel (0) target = $region9
    $region8: #{encoder_layer.7} parent=1 // pred_region
      _
    $region9: #{encoder_layer.7} parent=1 // pred_fallthru
      _
    // Predicated region
    $region10: #{encoder_layer.7} parent=1 // pred_check
      _
    $region11: #{encoder_layer.7} parent=1 // pred_check_branch
      %25 = sbr.rel (0) target = $region13
    $region12: #{encoder_layer.7} parent=1 // pred_region
      _
    $region13: #{encoder_layer.7} parent=1 // pred_fallthru
      _
    // Predicated region
    $region14: #{encoder_layer.7} parent=1 // pred_check
      _
    $region15: #{encoder_layer.7} parent=1 // pred_check_branch
      %27 = sbr.rel (0) target = $region17
    $region16: #{encoder_layer.7} parent=1 // pred_region
      %29 = dma.done [#allocation3], 256
    $region17: #{encoder_layer.7} parent=1 // pred_fallthru
      _
    %v30 = vld [vmem:[#allocation2] sm:$0xff]
    %v31 = vld [vmem:[#allocation2 + $0x8] sm:$0xff]
    %vm32 = vcmask 261120
    %v33 = vsel %vm32, %v30, 0.0
    %34 = vadd.xlane.f32.xlu0 %v33
    %v35 = vpop.xlane.xlu0 %34
    %v36 = vsel %vm32, %v31, 0.0
    %37 = vadd.xlane.f32.xlu0 %v36
    %v38 = vpop.xlane.xlu0 %37
    %v39 = vrcp.pop 32.0
    %v40 = vmul.f32 32.0, %v39
    %v41 = vsub.f32 1.0, %v40
    %v42 = vmul.f32 %v39, %v41
    %v43 = vadd.f32 %v39, %v42
    %vm44 = vweird.f32 %v39
    %v45 = vsel %vm44, %v39, %v43
    %v46 = vmul.f32 %v35, %v45
    %v47 = vmul.f32 %v38, %v45
    %v48 = vsub.f32 %v30, %v46
    %v49 = vsub.f32 %v31, %v47
    %v50 = vmul.f32 %v48, %v48
    %v51 = vmul.f32 %v49, %v49
    %v52 = vsel %vm32, %v50, 0.0
    %53 = vadd.xlane.f32.xlu0 %v52
    %v54 = vpop.xlane.xlu0 %53
    %v55 = vsel %vm32, %v51, 0.0
    %56 = vadd.xlane.f32.xlu0 %v55
    %v57 = vpop.xlane.xlu0 %56
    %v58 = vmul.f32 %v54, 0.032258064
    %v59 = vmul.f32 %v57, 0.032258064
    %v60 = vld [vmem:[%s1] sm:$0x1]
    %v62 = vperm.slane %v60, 0
    %v64 = vmul.f32 %v62, %v48
    %v65 = vmul.f32 %v62, %v49
    %v66 = vrsqrt.pop %v58
    %v67 = vmul.f32 %v66, %v58
    %v68 = vmul.f32 %v67, %v66
    %v69 = vmul.f32 0.5, %v68
    %v70 = vsub.f32 1.5, %v69
    %v71 = vmul.f32 %v66, %v70
    %v72 = vmul.f32 %v58, %v71
    %vm73 = vcmp.eq.f32.partialorder %v58, inf
    %v74 = vsel %vm73, %v58, %v72
    %vm75 = vcmp.eq.f32.partialorder %v58, 0.0
    %v76 = vand.u32 %v58, 2147483648
    %v77 = vsel %vm75, %v76, %v74
    %v78 = vrsqrt.pop %v59
    %v79 = vmul.f32 %v78, %v59
    %v80 = vmul.f32 %v79, %v78
    %v81 = vmul.f32 0.5, %v80
    %v82 = vsub.f32 1.5, %v81
    %v83 = vmul.f32 %v78, %v82
    %v84 = vmul.f32 %v59, %v83
    %vm85 = vcmp.eq.f32.partialorder %v59, inf
    %v86 = vsel %vm85, %v59, %v84
    %vm87 = vcmp.eq.f32.partialorder %v59, 0.0
    %v88 = vand.u32 %v59, 2147483648
    %v89 = vsel %vm87, %v88, %v86
    %v90 = vadd.f32 %v77, 1e-06
    %v91 = vadd.f32 %v89, 1e-06
    %v92 = vrcp.pop %v90
    %v93 = vmul.f32 %v90, %v92
    %v94 = vsub.f32 1.0, %v93
    %v95 = vmul.f32 %v92, %v94
    %v96 = vadd.f32 %v92, %v95
    %vm97 = vweird.f32 %v90
    %vm98 = vweird.f32 %v92
    %vm99 = vmor %vm97, %vm98
    %v100 = vsel %vm99, %v92, %v96
    %v101 = vand.u32 2147483647, %v90
    %vm102 = vcmp.eq.f32.partialorder %v101, 8.507059e+37
    %v103 = vand.u32 %v90, 2147483648
    %v104 = vor.u32 1.1754944e-38, %v103
    %v105 = vsel %vm102, %v104, %v100
    %v106 = vmul.f32 %v64, %v105
    %v107 = vrcp.pop %v91
    %v108 = vmul.f32 %v91, %v107
    %v109 = vsub.f32 1.0, %v108
    %v110 = vmul.f32 %v107, %v109
    %v111 = vadd.f32 %v107, %v110
    %vm112 = vweird.f32 %v91
    %vm113 = vweird.f32 %v107
    %vm114 = vmor %vm112, %vm113
    %v115 = vsel %vm114, %v107, %v111
    %v116 = vand.u32 2147483647, %v91
    %vm117 = vcmp.eq.f32.partialorder %v116, 8.507059e+37
    %v118 = vand.u32 %v91, 2147483648
    %v119 = vor.u32 1.1754944e-38, %v118
    %v120 = vsel %vm117, %v119, %v115
    %v121 = vmul.f32 %v65, %v120
    %v122 = vld [vmem:[%s2] sm:$0x1]
    %v124 = vperm.slane %v122, 0
    %v126 = vadd.f32 %v106, %v124
    %v127 = vadd.f32 %v121, %v124
    %128 = vst.msk [vmem:[%s3] sm:$0xff] %vm32, %v126
    %129 = vst.msk [vmem:[%s3 + $0x8] sm:$0xff] %vm32, %v127
    // Predicated region
    $region18: #{encoder_layer.7} parent=1 // pred_check
      _
    $region19: #{encoder_layer.7} parent=1 // pred_check_branch
      %131 = sbr.rel (0) target = $region21
    $region20: #{encoder_layer.7} parent=1 // pred_region
      _
    $region21: #{encoder_layer.7} parent=1 // pred_fallthru
      _
    // Predicated region
    $region22: #{encoder_layer.7} parent=1 // pred_check
      _
    $region23: #{encoder_layer.7} parent=1 // pred_check_branch
      %133 = sbr.rel (0) target = $region25
    $region24: #{encoder_layer.7} parent=1 // pred_region
      _
    $region25: #{encoder_layer.7} parent=1 // pred_fallthru
      _
    %134 = vsyncpa [#allocation3], 1

// kernel: encoder_layer.9
$region0: #{encoder_layer.9}
  #allocation0 [shape = 'u32[]', space=smem, size = 0x4, offset = 0x4, fixed_abs, tag = 'smem constant byte address 0x4 - core index']
  #allocation1 [shape = 'u32[72,128]{1,0:T(1,128)}', space=vmem, size = 0x9000, scoped, tag = 'internal scratch']
  %s0 = inlined_call_operand.vmem [shape: f32[16,96], index: 0, kind: input, shape index: {}]
  %s1 = inlined_call_operand.vmem [shape: f32[16,32], index: 1, kind: output, shape index: {}]
  %s2 = sld [smem:[#allocation0]]
  $region37: #{encoder_layer.9} parent=0
    _
  %s4 = ssub.s32 1, %s2
  %s5 = scalar_select 0, %s4, %s2
  loop: start=0, step=1, limit=4
  $region2: #{encoder_layer.9} parent=0 // loop_pre_header
    _
  $region3: #{encoder_layer.9} parent=0 // loop_header
    %s7 = sphi 0, %s11
    %p8 = scmp.ge.s32.totalorder %s7, 4
    %s17 = sphi 0, %s19
    %s20 = sphi 0, %s17
    %s21 = sphi 0, %s20
    %s37 = sphi 0, %s21
    %s43 = sphi 0, %s45
    %s46 = sphi 0, %s43
    %s47 = sphi 0, %s46
    %s63 = sphi 0, %s47
  $region4: #{encoder_layer.9} parent=0 // loop_header_branch
    %10 = sbr.rel (%p8) target = $region8
  $region5: #{encoder_layer.9} parent=0 // loop_body
    %s12 = ssub.s32 %s7, 1
    %s13 = ssub.s32 %s7, 2
    %s14 = sadd.s32 %s7, 1
    %s15 = ssub.s32 %s7, %s14
    %p16 = scmp.eq.s32.totalorder %s15, 0
    %s18 = sadd.s32 %s17, 1
    %s19 = scalar_select %p16, %s17, %s18
    %p22 = pneg %p16
    %p23 = scmp.eq.s32.totalorder %s7, 1
    %p24 = por %p22, %p23
    %p25 = scmp.ne.s32.totalorder %s17, %s20
    %p26 = scmp.eq.s32.totalorder %s7, 0
    %p27 = por %p25, %p26
    %p28 = scmp.ne.s32.totalorder %s17, %s20
    %p29 = scmp.eq.s32.totalorder %s12, 1
    %p30 = por %p28, %p29
    %p31 = scmp.ne.s32.totalorder %s20, %s21
    %p32 = scmp.eq.s32.totalorder %s12, 0
    %p33 = por %p31, %p32
    %p34 = scmp.ne.s32.totalorder %s20, %s21
    %p35 = scmp.eq.s32.totalorder %s13, 1
    %p36 = por %p34, %p35
    %p38 = scmp.ne.s32.totalorder %s21, %s37
    %p39 = scmp.eq.s32.totalorder %s13, 0
    %p40 = por %p38, %p39
    %s41 = ssub.s32 %s7, %s14
    %p42 = scmp.eq.s32.totalorder %s41, 0
    %s44 = sadd.s32 %s43, 1
    %s45 = scalar_select %p42, %s43, %s44
    %p48 = pneg %p42
    %p49 = scmp.eq.s32.totalorder %s7, 1
    %p50 = por %p48, %p49
    %p51 = scmp.ne.s32.totalorder %s43, %s46
    %p52 = scmp.eq.s32.totalorder %s7, 0
    %p53 = por %p51, %p52
    %p54 = scmp.ne.s32.totalorder %s43, %s46
    %p55 = scmp.eq.s32.totalorder %s12, 1
    %p56 = por %p54, %p55
    %p57 = scmp.ne.s32.totalorder %s46, %s47
    %p58 = scmp.eq.s32.totalorder %s12, 0
    %p59 = por %p57, %p58
    %p60 = scmp.ne.s32.totalorder %s46, %s47
    %p61 = scmp.eq.s32.totalorder %s13, 1
    %p62 = por %p60, %p61
    %p64 = scmp.ne.s32.totalorder %s47, %s63
    %p65 = scmp.eq.s32.totalorder %s13, 0
    %p66 = por %p64, %p65
    %p67 = scmp.le.s32.totalorder 1, %s7
    %p68 = scmp.lt.s32.totalorder %s7, 3
    %p69 = pnand %p67, %p68
    %p70 = pneg %p69
    // Predicated region
    $region9: #{encoder_layer.9} parent=5 // pred_check
      _
    $region10: #{encoder_layer.9} parent=5 // pred_check_branch
      %72 = sbr.rel (%p69) target = $region12
    $region11: #{encoder_layer.9} parent=5 // pred_region
      %s73 = ssub.s32 %s7, 1
    $region12: #{encoder_layer.9} parent=5 // pred_fallthru
      _
    %p74 = scmp.lt.s32.totalorder %s7, 2
    // Predicated region
    $region13: #{encoder_layer.9} parent=5 // pred_check
      %p75 = pneg %p74
    $region14: #{encoder_layer.9} parent=5 // pred_check_branch
      %77 = sbr.rel (%p75) target = $region16
    $region15: #{encoder_layer.9} parent=5 // pred_region
      // Predicated region
      $region17: #{encoder_layer.9} parent=15 // pred_check
        %p78 = pneg %p27
      $region18: #{encoder_layer.9} parent=15 // pred_check_branch
        %80 = sbr.rel (%p78) target = $region20
      $region19: #{encoder_layer.9} parent=15 // pred_region
        %p81 = scmp.lt.s32.totalorder %s7, 1
        %s82 = scalar_select %p81, %s7, 1
        %s83 = smul.addr %s82, 8
        %s84 = scalar_lea.vmem %s0, %s83
      $region20: #{encoder_layer.9} parent=15 // pred_fallthru
        _
    $region16: #{encoder_layer.9} parent=5 // pred_fallthru
      _
    %p85 = scmp.le.s32.totalorder 1, %s7
    %p86 = scmp.lt.s32.totalorder %s7, 3
    %p87 = pnand %p85, %p86
    %p88 = pneg %p87
    // Predicated region
    $region21: #{encoder_layer.9} parent=5 // pred_check
      _
    $region22: #{encoder_layer.9} parent=5 // pred_check_branch
      %90 = sbr.rel (%p87) target = $region24
    $region23: #{encoder_layer.9} parent=5 // pred_region
      %s91 = ssub.s32 %s7, 1
      %p92 = scmp.lt.s32.totalorder %s12, 1
      %s93 = scalar_select %p92, %s12, 1
      %s94 = smul.addr %s93, 8
      %s95 = scalar_lea.vmem %s0, %s94
      %p96 = pneg %p33
      %p97 = pneg %p30
      %p98 = pneg %p59
      %p99 = pneg %p56
      %p100 = scmp.lt.s32.totalorder %s12, 1
      %s101 = scalar_select %p100, %s12, 1
      %s102 = smul.addr %s101, 8
      %s103 = scalar_lea.vmem %s1, %s102
      %p104 = scmp.lt.s32.totalorder %s12, 1
      %s105 = scalar_select %p104, %s12, 1
      %s106 = smul.addr %s105, 8
      %s107 = scalar_lea.vmem %s0, %s106
      %p108 = scmp.lt.s32.totalorder %s12, 1
      %s109 = scalar_select %p108, %s12, 1
      %s110 = smul.addr %s109, 8
      %s111 = scalar_lea.vmem %s1, %s110
      %v113 = vld [vmem:[%s107] sm:$0xff]
      %v114 = vmul.f32 %v113, 0.35355338
      %v115 = vpack.c.bf16 %v114, %v114
      %v116 = vpack.c.bf16 %v113, %v113
      %118 = vrot.lane.b32.xlu0 %v116, 96
      %v119 = vpop.permute.xlu0 %118
      %vm120 = vcmask 64512
      %v122 = vsel %vm120, %v115, 0
      %v125 = vsel %vm120, %v119, 0
      %127 = vmatpush.bf16.xpose.msra.mxu0 0
      %128 = vmatpush.bf16.xpose.msra.mxu0 0
      %129 = vmatpush.bf16.xpose.msra.mxu0 0
      %130 = vmatpush.bf16.xpose.msra.mxu0 0
      %131 = vmatpush.bf16.xpose.msra.mxu0 0
      %132 = vmatpush.bf16.xpose.msra.mxu0 0
      %133 = vmatpush.bf16.xpose.msra.mxu0 0
      %134 = vmatpush.bf16.xpose.msra.mxu0 %v125
      %135 = vmatmul.bf16.gmra.mxu0 %v122
      %v136 = vpop.f32.mrf.mxu0
      %v137 = vadd.f32 0.0, %v136
      %v138 = vpop.f32.mrf.mxu0
      %139 = vdwg.mxu0
      %v140 = vsel %vm120, %v137, -inf
      %141 = vmax.xlane.f32.xlu0 %v140
      %v142 = vpop.xlane.xlu0 %141
      %v143 = vsub.f32 %v137, %v142
      %v144 = vmul.f32 %v143, 1.442695
      %v145 = vpow.pop %v144
      %v146 = vsel %vm120, %v145, 0.0
      %147 = vadd.xlane.f32.xlu0 %v146
      %v148 = vpop.xlane.xlu0 %147
      %v149 = vrcp.pop %v148
      %v150 = vmul.f32 %v145, %v149
      %v151 = vpack.c.bf16 %v150, %v150
      %152 = vrot.lane.b32.xlu0 %v116, 64
      %v153 = vpop.permute.xlu0 %152
      %v155 = vsel %vm120, %v151, 0
      %vm157 = vcmask 1043456
      %v159 = vsel %vm157, %v153, 0
      %161 = vmatpush.bf16.msra.mxu0 0
      %162 = vmatpush.bf16.msra.mxu0 0
      %163 = vmatpush.bf16.msra.mxu0 0
      %164 = vmatpush.bf16.msra.mxu0 0
      %165 = vmatpush.bf16.msra.mxu0 0
      %166 = vmatpush.bf16.msra.mxu0 0
      %167 = vmatpush.bf16.msra.mxu0 0
      %168 = vmatpush.bf16.msra.mxu0 %v159
      %169 = vmatmul.bf16.gmra.mxu0 %v155
      %v170 = vpop.f32.mrf.mxu0
      %v171 = vadd.f32 0.0, %v170
      %v172 = vpop.f32.mrf.mxu0
      %173 = vdwg.mxu0
      %174 = vst.msk [vmem:[%s111] sm:$0xff] %vm120, %v171
      %176 = vrot.lane.b32.xlu0 %v115, 120
      %v177 = vpop.permute.xlu0 %176
      %178 = vrot.lane.b32.xlu0 %v116, 88
      %v179 = vpop.permute.xlu0 %178
      %v181 = vsel %vm120, %v177, 0
      %v184 = vsel %vm120, %v179, 0
      %186 = vmatpush.bf16.xpose.msra.mxu0 0
      %187 = vmatpush.bf16.xpose.msra.mxu0 0
      %188 = vmatpush.bf16.xpose.msra.mxu0 0
      %189 = vmatpush.bf16.xpose.msra.mxu0 0
      %190 = vmatpush.bf16.xpose.msra.mxu0 0
      %191 = vmatpush.bf16.xpose.msra.mxu0 0
      %192 = vmatpush.bf16.xpose.msra.mxu0 0
      %193 = vmatpush.bf16.xpose.msra.mxu0 %v184
      %194 = vmatmul.bf16.gmra.mxu0 %v181
      %v195 = vpop.f32.mrf.mxu0
      %v196 = vadd.f32 0.0, %v195
      %v197 = vpop.f32.mrf.mxu0
      %198 = vdwg.mxu0
      %v199 = vsel %vm120, %v196, -inf
      %200 = vmax.xlane.f32.xlu0 %v199
      %v201 = vpop.xlane.xlu0 %200
      %v202 = vsub.f32 %v196, %v201
      %v203 = vmul.f32 %v202, 1.442695
      %v204 = vpow.pop %v203
      %v205 = vsel %vm120, %v204, 0.0
      %206 = vadd.xlane.f32.xlu0 %v205
      %v207 = vpop.xlane.xlu0 %206
      %v208 = vrcp.pop %v207
      %v209 = vmul.f32 %v204, %v208
      %v210 = vpack.c.bf16 %v209, %v209
      %211 = vrot.lane.b32.xlu0 %v116, 56
      %v212 = vpop.permute.xlu0 %211
      %v214 = vsel %vm120, %v210, 0
      %v217 = vsel %vm157, %v212, 0
      %219 = vmatpush.bf16.msra.mxu0 0
      %220 = vmatpush.bf16.msra.mxu0 0
      %221 = vmatpush.bf16.msra.mxu0 0
      %222 = vmatpush.bf16.msra.mxu0 0
      %223 = vmatpush.bf16.msra.mxu0 0
      %224 = vmatpush.bf16.msra.mxu0 0
      %225 = vmatpush.bf16.msra.mxu0 0
      %226 = vmatpush.bf16.msra.mxu0 %v217
      %227 = vmatmul.bf16.gmra.mxu0 %v214
      %v228 = vpop.f32.mrf.mxu0
      %v229 = vadd.f32 0.0, %v228
      %v230 = vpop.f32.mrf.mxu0
      %231 = vdwg.mxu0
      %233 = vrot.lane.b32.xlu0 %v229, 8
      %v234 = vpop.permute.xlu0 %233
      %vm236 = vcmask 130112
      %237 = vst.msk [vmem:[%s111] sm:$0xff] %vm236, %v234
      %238 = vrot.lane.b32.xlu0 %v115, 112
      %v239 = vpop.permute.xlu0 %238
      %240 = vrot.lane.b32.xlu0 %v116, 80
      %v241 = vpop.permute.xlu0 %240
      %v243 = vsel %vm120, %v239, 0
      %v246 = vsel %vm120, %v241, 0
      %248 = vmatpush.bf16.xpose.msra.mxu0 0
      %249 = vmatpush.bf16.xpose.msra.mxu0 0
      %250 = vmatpush.bf16.xpose.msra.mxu0 0
      %251 = vmatpush.bf16.xpose.msra.mxu0 0
      %252 = vmatpush.bf16.xpose.msra.mxu0 0
      %253 = vmatpush.bf16.xpose.msra.mxu0 0
      %254 = vmatpush.bf16.xpose.msra.mxu0 0
      %255 = vmatpush.bf16.xpose.msra.mxu0 %v246
      %256 = vmatmul.bf16.gmra.mxu0 %v243
      %v257 = vpop.f32.mrf.mxu0
      %v258 = vadd.f32 0.0, %v257
      %v259 = vpop.f32.mrf.mxu0
      %260 = vdwg.mxu0
      %v261 = vsel %vm120, %v258, -inf
      %262 = vmax.xlane.f32.xlu0 %v261
      %v263 = vpop.xlane.xlu0 %262
      %v264 = vsub.f32 %v258, %v263
      %v265 = vmul.f32 %v264, 1.442695
      %v266 = vpow.pop %v265
      %v267 = vsel %vm120, %v266, 0.0
      %268 = vadd.xlane.f32.xlu0 %v267
      %v269 = vpop.xlane.xlu0 %268
      %v270 = vrcp.pop %v269
      %v271 = vmul.f32 %v266, %v270
      %v272 = vpack.c.bf16 %v271, %v271
      %273 = vrot.lane.b32.xlu0 %v116, 48
      %v274 = vpop.permute.xlu0 %273
      %v276 = vsel %vm120, %v272, 0
      %v279 = vsel %vm157, %v274, 0
      %281 = vmatpush.bf16.msra.mxu0 0
      %282 = vmatpush.bf16.msra.mxu0 0
      %283 = vmatpush.bf16.msra.mxu0 0
      %284 = vmatpush.bf16.msra.mxu0 0
      %285 = vmatpush.bf16.msra.mxu0 0
      %286 = vmatpush.bf16.msra.mxu0 0
      %287 = vmatpush.bf16.msra.mxu0 0
      %288 = vmatpush.bf16.msra.mxu0 %v279
      %289 = vmatmul.bf16.gmra.mxu0 %v276
      %v290 = vpop.f32.mrf.mxu0
      %v291 = vadd.f32 0.0, %v290
      %v292 = vpop.f32.mrf.mxu0
      %293 = vdwg.mxu0
      %295 = vrot.lane.b32.xlu0 %v291, 16
      %v296 = vpop.permute.xlu0 %295
      %vm298 = vcmask 195712
      %299 = vst.msk [vmem:[%s111] sm:$0xff] %vm298, %v296
      %300 = vrot.lane.b32.xlu0 %v115, 104
      %v301 = vpop.permute.xlu0 %300
      %302 = vrot.lane.b32.xlu0 %v116, 72
      %v303 = vpop.permute.xlu0 %302
      %v305 = vsel %vm120, %v301, 0
      %v308 = vsel %vm120, %v303, 0
      %310 = vmatpush.bf16.xpose.msra.mxu0 0
      %311 = vmatpush.bf16.xpose.msra.mxu0 0
      %312 = vmatpush.bf16.xpose.msra.mxu0 0
      %313 = vmatpush.bf16.xpose.msra.mxu0 0
      %314 = vmatpush.bf16.xpose.msra.mxu0 0
      %315 = vmatpush.bf16.xpose.msra.mxu0 0
      %316 = vmatpush.bf16.xpose.msra.mxu0 0
      %317 = vmatpush.bf16.xpose.msra.mxu0 %v308
      %318 = vmatmul.bf16.gmra.mxu0 %v305
      %v319 = vpop.f32.mrf.mxu0
      %v320 = vadd.f32 0.0, %v319
      %v321 = vpop.f32.mrf.mxu0
      %322 = vdwg.mxu0
      %v323 = vsel %vm120, %v320, -inf
      %324 = vmax.xlane.f32.xlu0 %v323
      %v325 = vpop.xlane.xlu0 %324
      %v326 = vsub.f32 %v320, %v325
      %v327 = vmul.f32 %v326, 1.442695
      %v328 = vpow.pop %v327
      %v329 = vsel %vm120, %v328, 0.0
      %330 = vadd.xlane.f32.xlu0 %v329
      %v331 = vpop.xlane.xlu0 %330
      %v332 = vrcp.pop %v331
      %v333 = vmul.f32 %v328, %v332
      %v334 = vpack.c.bf16 %v333, %v333
      %335 = vrot.lane.b32.xlu0 %v116, 40
      %v336 = vpop.permute.xlu0 %335
      %v338 = vsel %vm120, %v334, 0
      %v341 = vsel %vm157, %v336, 0
      %343 = vmatpush.bf16.msra.mxu0 0
      %344 = vmatpush.bf16.msra.mxu0 0
      %345 = vmatpush.bf16.msra.mxu0 0
      %346 = vmatpush.bf16.msra.mxu0 0
      %347 = vmatpush.bf16.msra.mxu0 0
      %348 = vmatpush.bf16.msra.mxu0 0
      %349 = vmatpush.bf16.msra.mxu0 0
      %350 = vmatpush.bf16.msra.mxu0 %v341
      %351 = vmatmul.bf16.gmra.mxu0 %v338
      %v352 = vpop.f32.mrf.mxu0
      %v353 = vadd.f32 0.0, %v352
      %v354 = vpop.f32.mrf.mxu0
      %355 = vdwg.mxu0
      %357 = vrot.lane.b32.xlu0 %v353, 24
      %v358 = vpop.permute.xlu0 %357
      %vm360 = vcmask 261312
      %361 = vst.msk [vmem:[%s111] sm:$0xff] %vm360, %v358
      %p362 = scmp.lt.s32.totalorder %s12, 1
      %s363 = scalar_select %p362, %s12, 1
      %s364 = smul.addr %s363, 8
      %s365 = scalar_lea.vmem %s1, %s364
      // Predicated region
      $region25: #{encoder_layer.9} parent=23 // pred_check
        %p366 = pneg %p56
      $region26: #{encoder_layer.9} parent=23 // pred_check_branch
        %368 = sbr.rel (%p366) target = $region28
      $region27: #{encoder_layer.9} parent=23 // pred_region
        _
      $region28: #{encoder_layer.9} parent=23 // pred_fallthru
        _
    $region24: #{encoder_layer.9} parent=5 // pred_fallthru
      _
    %p369 = scmp.le.s32.totalorder 2, %s7
    // Predicated region
    $region29: #{encoder_layer.9} parent=5 // pred_check
      %p370 = pneg %p369
    $region30: #{encoder_layer.9} parent=5 // pred_check_branch
      %372 = sbr.rel (%p370) target = $region32
    $region31: #{encoder_layer.9} parent=5 // pred_region
      %s373 = ssub.s32 %s7, 2
      // Predicated region
      $region33: #{encoder_layer.9} parent=31 // pred_check
        %p374 = pneg %p62
      $region34: #{encoder_layer.9} parent=31 // pred_check_branch
        %376 = sbr.rel (%p374) target = $region36
      $region35: #{encoder_layer.9} parent=31 // pred_region
        %p377 = scmp.lt.s32.totalorder %s13, 1
        %s378 = scalar_select %p377, %s13, 1
        %s379 = smul.addr %s378, 8
        %s380 = scalar_lea.vmem %s1, %s379
      $region36: #{encoder_layer.9} parent=31 // pred_fallthru
        _
    $region32: #{encoder_layer.9} parent=5 // pred_fallthru
      _
  $region6: #{encoder_layer.9} parent=0 // loop_footer
    %s11 = sadd.s32 1, %s7
  $region7: #{encoder_layer.9} parent=0 // loop_footer_branch
    %6 = sbr.rel target = $region3
  $region8: #{encoder_layer.9} parent=0 // loop_exit
    _

// kernel: encoder_layer.10
$region0: #{encoder_layer.10}
  #allocation0 [shape = 'u32[]', space=smem, size = 0x4, offset = 0x4, fixed_abs, tag = 'smem constant byte address 0x4 - core index']
  #allocation1 [shape = 'u32[72,128]{1,0:T(1,128)}', space=vmem, size = 0x9000, scoped, tag = 'internal scratch']
  #allocation2 [shape = 'f32[16,32]{1,0:T(8,128)}', space=vmem, size = 0x2000, scoped, tag = 'scratch operand']
  %s0 = inlined_call_operand.vmem [shape: f32[16,32], index: 0, kind: input, shape index: {}]
  %s1 = inlined_call_operand.vmem [shape: bf16[32,32], index: 1, kind: input, shape index: {}]
  %s2 = inlined_call_operand.vmem [shape: f32[1,32], index: 2, kind: input, shape index: {}]
  %s3 = inlined_call_operand.hbm [shape: f32[16,32], index: 3, kind: input, shape index: {}]
  %s4 = inlined_call_operand.vmem [shape: f32[16,32], index: 4, kind: output, shape index: {}]
  %s5 = sld [smem:[#allocation0]]
  $region38: #{encoder_layer.10} parent=0
    _
  %s7 = ssub.s32 1, %s5
  %s8 = scalar_select 0, %s7, %s5
  $region1: #{encoder_layer.10} parent=0
    #allocation3 [shape = 'u8[8192]{0}', space=vmem, size = 0x2000, scoped, tag = 'input window, operand 3, single buffered']
    #allocation4 [shape = 's32[1]{0}', space=sflag, size = 0x4, scoped, tag = 'scoped memory for encoder_layer.10']
    %9 = vsyncpa [#allocation4], 0
    // Predicated region
    $region2: #{encoder_layer.10} parent=1 // pred_check
      _
    $region3: #{encoder_layer.10} parent=1 // pred_check_branch
      %11 = sbr.rel (0) target = $region5
    $region4: #{encoder_layer.10} parent=1 // pred_region
      _
    $region5: #{encoder_layer.10} parent=1 // pred_fallthru
      _
    // Predicated region
    $region6: #{encoder_layer.10} parent=1 // pred_check
      _
    $region7: #{encoder_layer.10} parent=1 // pred_check_branch
      %13 = sbr.rel (0) target = $region9
    $region8: #{encoder_layer.10} parent=1 // pred_region
      _
    $region9: #{encoder_layer.10} parent=1 // pred_fallthru
      _
    // Predicated region
    $region10: #{encoder_layer.10} parent=1 // pred_check
      _
    $region11: #{encoder_layer.10} parent=1 // pred_check_branch
      %15 = sbr.rel (0) target = $region13
    $region12: #{encoder_layer.10} parent=1 // pred_region
      _
    $region13: #{encoder_layer.10} parent=1 // pred_fallthru
      _
    // Predicated region
    $region14: #{encoder_layer.10} parent=1 // pred_check
      _
    $region15: #{encoder_layer.10} parent=1 // pred_check_branch
      %17 = sbr.rel (0) target = $region17
    $region16: #{encoder_layer.10} parent=1 // pred_region
      %19 = vsyncadd [#allocation4], 0
      %s20 = sshll.u32 %s3, 4
      %s21 = int_to_ptr.hbm [resolvable:$true] %s20
      %s22 = sshll.u32 [#allocation3], 4
      %s23 = int_to_ptr.vmem [resolvable:$true] %s22
      %28 = dma.hbm_to_vmem [thread:$0]  %s21, 256, %s23, [#allocation4], 128, 128, 8
    $region17: #{encoder_layer.10} parent=1 // pred_fallthru
      _
    // Predicated region
    $region18: #{encoder_layer.10} parent=1 // pred_check
      _
    $region19: #{encoder_layer.10} parent=1 // pred_check_branch
      %30 = sbr.rel (0) target = $region21
    $region20: #{encoder_layer.10} parent=1 // pred_region
      %32 = dma.done [#allocation4], 256
    $region21: #{encoder_layer.10} parent=1 // pred_fallthru
      _
    %p34 = scmp.eq.s32.totalorder 0, 0
    // Predicated region
    $region22: #{encoder_layer.10} parent=1 // pred_check
      %p35 = pneg %p34
    $region23: #{encoder_layer.10} parent=1 // pred_check_branch
      %37 = sbr.rel (%p35) target = $region25
    $region24: #{encoder_layer.10} parent=1 // pred_region
      %vm38 = vcmask 261120
      %39 = vst.msk [vmem:[#allocation2] sm:$0xff] %vm38, 0.0
      %40 = vst.msk [vmem:[#allocation2 + $0x8] sm:$0xff] %vm38, 0.0
    $region25: #{encoder_layer.10} parent=1 // pred_fallthru
      _
    %v41 = vld [vmem:[#allocation2] sm:$0xff]
    %v42 = vld [vmem:[#allocation2 + $0x8] sm:$0xff]
    %v43 = vld [vmem:[%s0] sm:$0xff]
    %v44 = vld [vmem:[%s0 + $0x8] sm:$0xff]
    %v45 = vpack.c.bf16 %v44, %v43
    %v46 = vld [vmem:[%s1] sm:$0xf]
    %v47 = vld [vmem:[%s1 + $0x4] sm:$0xf]
    %v48 = vld [vmem:[%s1 + $0x8] sm:$0xf]
    %v49 = vld [vmem:[%s1 + $0xc] sm:$0xf]
    %v54 = vunpack.c.l.b16 %v46
    %v55 = vunpack.c.l.b16 %v47
    %v56 = vunpack.c.l.b16 %v48
    %v57 = vunpack.c.l.b16 %v49
    %v58 = vpack.c.b16 %v55, %v54
    %v59 = vpack.c.b16 %v57, %v56
    %vm62 = vcmask 261120
    %v64 = vsel %vm62, %v45, 0
    %66 = vmatpush.bf16.msra.mxu0 0
    %67 = vmatpush.bf16.msra.mxu0 0
    %68 = vmatpush.bf16.msra.mxu0 0
    %69 = vmatpush.bf16.msra.mxu0 0
    %70 = vmatpush.bf16.msra.mxu0 0
    %71 = vmatpush.bf16.msra.mxu0 0
    %72 = vmatpush.bf16.msra.mxu0 %v59
    %73 = vmatpush.bf16.msra.mxu0 %v58
    %74 = vmatmul.bf16.gmra.mxu0 %v64
    %v75 = vpop.f32.mrf.mxu0
    %v76 = vadd.f32 0.0, %v75
    %v77 = vpop.f32.mrf.mxu0
    %v78 = vadd.f32 0.0, %v77
    %79 = vdwg.mxu0
    %v80 = vadd.f32 %v41, %v76
    %v81 = vadd.f32 %v42, %v78
    %82 = vst.msk [vmem:[#allocation2] sm:$0xff] %vm62, %v80
    %83 = vst.msk [vmem:[#allocation2 + $0x8] sm:$0xff] %vm62, %v81
    // Predicated region
    $region26: #{encoder_layer.10} parent=1 // pred_check
      %p84 = pneg %p34
    $region27: #{encoder_layer.10} parent=1 // pred_check_branch
      %86 = sbr.rel (%p84) target = $region29
    $region28: #{encoder_layer.10} parent=1 // pred_region
      %v87 = vld [vmem:[#allocation2] sm:$0xff]
      %v88 = vld [vmem:[#allocation2 + $0x8] sm:$0xff]
      %v89 = vld [vmem:[%s2] sm:$0x1]
      %v91 = vperm.slane %v89, 0
      %v93 = vadd.f32 %v87, %v91
      %v94 = vadd.f32 %v88, %v91
      %v95 = vld [vmem:[#allocation3] sm:$0xff]
      %v96 = vld [vmem:[#allocation3 + $0x8] sm:$0xff]
      %v97 = vadd.f32 %v93, %v95
      %v98 = vadd.f32 %v94, %v96
      %99 = vst.msk [vmem:[%s4] sm:$0xff] %vm62, %v97
      %100 = vst.msk [vmem:[%s4 + $0x8] sm:$0xff] %vm62, %v98
    $region29: #{encoder_layer.10} parent=1 // pred_fallthru
      _
    // Predicated region
    $region30: #{encoder_layer.10} parent=1 // pred_check
      _
    $region31: #{encoder_layer.10} parent=1 // pred_check_branch
      %102 = sbr.rel (0) target = $region33
    $region32: #{encoder_layer.10} parent=1 // pred_region
      _
    $region33: #{encoder_layer.10} parent=1 // pred_fallthru
      _
    // Predicated region
    $region34: #{encoder_layer.10} parent=1 // pred_check
      _
    $region35: #{encoder_layer.10} parent=1 // pred_check_branch
      %104 = sbr.rel (0) target = $region37
    $region36: #{encoder_layer.10} parent=1 // pred_region
      _
    $region37: #{encoder_layer.10} parent=1 // pred_fallthru
      _
    %105 = vsyncpa [#allocation4], 1

// kernel: encoder_layer.12
$region0: #{encoder_layer.12}
  #allocation0 [shape = 'u32[]', space=smem, size = 0x4, offset = 0x4, fixed_abs, tag = 'smem constant byte address 0x4 - core index']
  #allocation1 [shape = 'u32[72,128]{1,0:T(1,128)}', space=vmem, size = 0x9000, scoped, tag = 'internal scratch']
  #allocation2 [shape = 'f32[16,128]{1,0:T(8,128)}', space=vmem, size = 0x2000, scoped, tag = 'scratch operand']
  %s0 = inlined_call_operand.vmem [shape: f32[16,32], index: 0, kind: input, shape index: {}]
  %s1 = inlined_call_operand.vmem [shape: bf16[32,128], index: 1, kind: input, shape index: {}]
  %s2 = inlined_call_operand.vmem [shape: f32[1,128], index: 2, kind: input, shape index: {}]
  %s3 = inlined_call_operand.vmem [shape: f32[16,128], index: 3, kind: output, shape index: {}]
  %s4 = sld [smem:[#allocation0]]
  $region30: #{encoder_layer.12} parent=0
    _
  %s6 = ssub.s32 1, %s4
  %s7 = scalar_select 0, %s6, %s4
  // Predicated region
  $region2: #{encoder_layer.12} parent=0 // pred_check
    _
  $region3: #{encoder_layer.12} parent=0 // pred_check_branch
    %9 = sbr.rel (0) target = $region5
  $region4: #{encoder_layer.12} parent=0 // pred_region
    _
  $region5: #{encoder_layer.12} parent=0 // pred_fallthru
    _
  // Predicated region
  $region6: #{encoder_layer.12} parent=0 // pred_check
    _
  $region7: #{encoder_layer.12} parent=0 // pred_check_branch
    %11 = sbr.rel (0) target = $region9
  $region8: #{encoder_layer.12} parent=0 // pred_region
    _
  $region9: #{encoder_layer.12} parent=0 // pred_fallthru
    _
  // Predicated region
  $region10: #{encoder_layer.12} parent=0 // pred_check
    _
  $region11: #{encoder_layer.12} parent=0 // pred_check_branch
    %13 = sbr.rel (0) target = $region13
  $region12: #{encoder_layer.12} parent=0 // pred_region
    _
  $region13: #{encoder_layer.12} parent=0 // pred_fallthru
    _
  %p15 = scmp.eq.s32.totalorder 0, 0
  // Predicated region
  $region14: #{encoder_layer.12} parent=0 // pred_check
    %p16 = pneg %p15
  $region15: #{encoder_layer.12} parent=0 // pred_check_branch
    %18 = sbr.rel (%p16) target = $region17
  $region16: #{encoder_layer.12} parent=0 // pred_region
    %19 = vst [vmem:[#allocation2] sm:$0xff] 0.0
    %20 = vst [vmem:[#allocation2 + $0x8] sm:$0xff] 0.0
  $region17: #{encoder_layer.12} parent=0 // pred_fallthru
    _
  %v21 = vld [vmem:[#allocation2] sm:$0xff]
  %v22 = vld [vmem:[#allocation2 + $0x8] sm:$0xff]
  %v23 = vld [vmem:[%s0] sm:$0xff]
  %v24 = vld [vmem:[%s0 + $0x8] sm:$0xff]
  %v25 = vpack.c.bf16 %v24, %v23
  %v26 = vld [vmem:[%s1] sm:$0xf]
  %v27 = vld [vmem:[%s1 + $0x4] sm:$0xf]
  %v28 = vld [vmem:[%s1 + $0x8] sm:$0xf]
  %v29 = vld [vmem:[%s1 + $0xc] sm:$0xf]
  %v34 = vunpack.c.l.b16 %v26
  %v35 = vunpack.c.l.b16 %v27
  %v36 = vunpack.c.l.b16 %v28
  %v37 = vunpack.c.l.b16 %v29
  %v38 = vpack.c.b16 %v35, %v34
  %v39 = vpack.c.b16 %v37, %v36
  %vm42 = vcmask 261120
  %v44 = vsel %vm42, %v25, 0
  %46 = vmatpush.bf16.msra.mxu0 0
  %47 = vmatpush.bf16.msra.mxu0 0
  %48 = vmatpush.bf16.msra.mxu0 0
  %49 = vmatpush.bf16.msra.mxu0 0
  %50 = vmatpush.bf16.msra.mxu0 0
  %51 = vmatpush.bf16.msra.mxu0 0
  %52 = vmatpush.bf16.msra.mxu0 %v39
  %53 = vmatpush.bf16.msra.mxu0 %v38
  %54 = vmatmul.bf16.gmra.mxu0 %v44
  %v55 = vpop.f32.mrf.mxu0
  %v56 = vadd.f32 0.0, %v55
  %v57 = vpop.f32.mrf.mxu0
  %v58 = vadd.f32 0.0, %v57
  %59 = vdwg.mxu0
  %v60 = vadd.f32 %v21, %v56
  %v61 = vadd.f32 %v22, %v58
  %62 = vst [vmem:[#allocation2] sm:$0xff] %v60
  %63 = vst [vmem:[#allocation2 + $0x8] sm:$0xff] %v61
  // Predicated region
  $region18: #{encoder_layer.12} parent=0 // pred_check
    %p64 = pneg %p15
  $region19: #{encoder_layer.12} parent=0 // pred_check_branch
    %66 = sbr.rel (%p64) target = $region21
  $region20: #{encoder_layer.12} parent=0 // pred_region
    %v67 = vld [vmem:[#allocation2] sm:$0xff]
    %v68 = vld [vmem:[#allocation2 + $0x8] sm:$0xff]
    %v69 = vld [vmem:[%s2] sm:$0x1]
    %v71 = vperm.slane %v69, 0
    %v73 = vadd.f32 %v67, %v71
    %v74 = vadd.f32 %v68, %v71
    %v75 = vmax.f32 %v73, 0.0
    %v76 = vmax.f32 %v74, 0.0
    %77 = vst [vmem:[%s3] sm:$0xff] %v75
    %78 = vst [vmem:[%s3 + $0x8] sm:$0xff] %v76
  $region21: #{encoder_layer.12} parent=0 // pred_fallthru
    _
  // Predicated region
  $region22: #{encoder_layer.12} parent=0 // pred_check
    _
  $region23: #{encoder_layer.12} parent=0 // pred_check_branch
    %80 = sbr.rel (0) target = $region25
  $region24: #{encoder_layer.12} parent=0 // pred_region
    _
  $region25: #{encoder_layer.12} parent=0 // pred_fallthru
    _
  // Predicated region
  $region26: #{encoder_layer.12} parent=0 // pred_check
    _
  $region27: #{encoder_layer.12} parent=0 // pred_check_branch
    %82 = sbr.rel (0) target = $region29
  $region28: #{encoder_layer.12} parent=0 // pred_region
    _
  $region29: #{encoder_layer.12} parent=0 // pred_fallthru
    _

// kernel: encoder_layer.11
$region0: #{encoder_layer.11}
  #allocation0 [shape = 'u32[]', space=smem, size = 0x4, offset = 0x4, fixed_abs, tag = 'smem constant byte address 0x4 - core index']
  #allocation1 [shape = 'u32[72,128]{1,0:T(1,128)}', space=vmem, size = 0x9000, scoped, tag = 'internal scratch']
  %s0 = inlined_call_operand.vmem [shape: f32[16,32], index: 0, kind: input, shape index: {}]
  %s1 = inlined_call_operand.vmem [shape: f32[1,32], index: 1, kind: input, shape index: {}]
  %s2 = inlined_call_operand.vmem [shape: f32[1,32], index: 2, kind: input, shape index: {}]
  %s3 = inlined_call_operand.vmem [shape: f32[16,32], index: 3, kind: output, shape index: {}]
  %s4 = sld [smem:[#allocation0]]
  $region22: #{encoder_layer.11} parent=0
    _
  %s6 = ssub.s32 1, %s4
  %s7 = scalar_select 0, %s6, %s4
  // Predicated region
  $region2: #{encoder_layer.11} parent=0 // pred_check
    _
  $region3: #{encoder_layer.11} parent=0 // pred_check_branch
    %9 = sbr.rel (0) target = $region5
  $region4: #{encoder_layer.11} parent=0 // pred_region
    _
  $region5: #{encoder_layer.11} parent=0 // pred_fallthru
    _
  // Predicated region
  $region6: #{encoder_layer.11} parent=0 // pred_check
    _
  $region7: #{encoder_layer.11} parent=0 // pred_check_branch
    %11 = sbr.rel (0) target = $region9
  $region8: #{encoder_layer.11} parent=0 // pred_region
    _
  $region9: #{encoder_layer.11} parent=0 // pred_fallthru
    _
  // Predicated region
  $region10: #{encoder_layer.11} parent=0 // pred_check
    _
  $region11: #{encoder_layer.11} parent=0 // pred_check_branch
    %13 = sbr.rel (0) target = $region13
  $region12: #{encoder_layer.11} parent=0 // pred_region
    _
  $region13: #{encoder_layer.11} parent=0 // pred_fallthru
    _
  %v14 = vld [vmem:[%s0] sm:$0xff]
  %v15 = vld [vmem:[%s0 + $0x8] sm:$0xff]
  %vm16 = vcmask 261120
  %v17 = vsel %vm16, %v14, 0.0
  %18 = vadd.xlane.f32.xlu0 %v17
  %v19 = vpop.xlane.xlu0 %18
  %v20 = vsel %vm16, %v15, 0.0
  %21 = vadd.xlane.f32.xlu0 %v20
  %v22 = vpop.xlane.xlu0 %21
  %v23 = vrcp.pop 32.0
  %v24 = vmul.f32 32.0, %v23
  %v25 = vsub.f32 1.0, %v24
  %v26 = vmul.f32 %v23, %v25
  %v27 = vadd.f32 %v23, %v26
  %vm28 = vweird.f32 %v23
  %v29 = vsel %vm28, %v23, %v27
  %v30 = vmul.f32 %v19, %v29
  %v31 = vmul.f32 %v22, %v29
  %v32 = vsub.f32 %v14, %v30
  %v33 = vsub.f32 %v15, %v31
  %v34 = vmul.f32 %v32, %v32
  %v35 = vmul.f32 %v33, %v33
  %v36 = vsel %vm16, %v34, 0.0
  %37 = vadd.xlane.f32.xlu0 %v36
  %v38 = vpop.xlane.xlu0 %37
  %v39 = vsel %vm16, %v35, 0.0
  %40 = vadd.xlane.f32.xlu0 %v39
  %v41 = vpop.xlane.xlu0 %40
  %v42 = vmul.f32 %v38, 0.032258064
  %v43 = vmul.f32 %v41, 0.032258064
  %v44 = vld [vmem:[%s1] sm:$0x1]
  %v46 = vperm.slane %v44, 0
  %v48 = vmul.f32 %v46, %v32
  %v49 = vmul.f32 %v46, %v33
  %v50 = vrsqrt.pop %v42
  %v51 = vmul.f32 %v50, %v42
  %v52 = vmul.f32 %v51, %v50
  %v53 = vmul.f32 0.5, %v52
  %v54 = vsub.f32 1.5, %v53
  %v55 = vmul.f32 %v50, %v54
  %v56 = vmul.f32 %v42, %v55
  %vm57 = vcmp.eq.f32.partialorder %v42, inf
  %v58 = vsel %vm57, %v42, %v56
  %vm59 = vcmp.eq.f32.partialorder %v42, 0.0
  %v60 = vand.u32 %v42, 2147483648
  %v61 = vsel %vm59, %v60, %v58
  %v62 = vrsqrt.pop %v43
  %v63 = vmul.f32 %v62, %v43
  %v64 = vmul.f32 %v63, %v62
  %v65 = vmul.f32 0.5, %v64
  %v66 = vsub.f32 1.5, %v65
  %v67 = vmul.f32 %v62, %v66
  %v68 = vmul.f32 %v43, %v67
  %vm69 = vcmp.eq.f32.partialorder %v43, inf
  %v70 = vsel %vm69, %v43, %v68
  %vm71 = vcmp.eq.f32.partialorder %v43, 0.0
  %v72 = vand.u32 %v43, 2147483648
  %v73 = vsel %vm71, %v72, %v70
  %v74 = vadd.f32 %v61, 1e-06
  %v75 = vadd.f32 %v73, 1e-06
  %v76 = vrcp.pop %v74
  %v77 = vmul.f32 %v74, %v76
  %v78 = vsub.f32 1.0, %v77
  %v79 = vmul.f32 %v76, %v78
  %v80 = vadd.f32 %v76, %v79
  %vm81 = vweird.f32 %v74
  %vm82 = vweird.f32 %v76
  %vm83 = vmor %vm81, %vm82
  %v84 = vsel %vm83, %v76, %v80
  %v85 = vand.u32 2147483647, %v74
  %vm86 = vcmp.eq.f32.partialorder %v85, 8.507059e+37
  %v87 = vand.u32 %v74, 2147483648
  %v88 = vor.u32 1.1754944e-38, %v87
  %v89 = vsel %vm86, %v88, %v84
  %v90 = vmul.f32 %v48, %v89
  %v91 = vrcp.pop %v75
  %v92 = vmul.f32 %v75, %v91
  %v93 = vsub.f32 1.0, %v92
  %v94 = vmul.f32 %v91, %v93
  %v95 = vadd.f32 %v91, %v94
  %vm96 = vweird.f32 %v75
  %vm97 = vweird.f32 %v91
  %vm98 = vmor %vm96, %vm97
  %v99 = vsel %vm98, %v91, %v95
  %v100 = vand.u32 2147483647, %v75
  %vm101 = vcmp.eq.f32.partialorder %v100, 8.507059e+37
  %v102 = vand.u32 %v75, 2147483648
  %v103 = vor.u32 1.1754944e-38, %v102
  %v104 = vsel %vm101, %v103, %v99
  %v105 = vmul.f32 %v49, %v104
  %v106 = vld [vmem:[%s2] sm:$0x1]
  %v108 = vperm.slane %v106, 0
  %v110 = vadd.f32 %v90, %v108
  %v111 = vadd.f32 %v105, %v108
  %112 = vst.msk [vmem:[%s3] sm:$0xff] %vm16, %v110
  %113 = vst.msk [vmem:[%s3 + $0x8] sm:$0xff] %vm16, %v111
  // Predicated region
  $region14: #{encoder_layer.11} parent=0 // pred_check
    _
  $region15: #{encoder_layer.11} parent=0 // pred_check_branch
    %115 = sbr.rel (0) target = $region17
  $region16: #{encoder_layer.11} parent=0 // pred_region
    _
  $region17: #{encoder_layer.11} parent=0 // pred_fallthru
    _
  // Predicated region
  $region18: #{encoder_layer.11} parent=0 // pred_check
    _
  $region19: #{encoder_layer.11} parent=0 // pred_check_branch
    %117 = sbr.rel (0) target = $region21
  $region20: #{encoder_layer.11} parent=0 // pred_region
    _
  $region21: #{encoder_layer.11} parent=0 // pred_fallthru
    _

// kernel: encoder_layer.13
$region0: #{encoder_layer.13}
  #allocation0 [shape = 'u32[]', space=smem, size = 0x4, offset = 0x4, fixed_abs, tag = 'smem constant byte address 0x4 - core index']
  #allocation1 [shape = 'u32[72,128]{1,0:T(1,128)}', space=vmem, size = 0x9000, scoped, tag = 'internal scratch']
  #allocation2 [shape = 'f32[16,32]{1,0:T(8,128)}', space=vmem, size = 0x2000, scoped, tag = 'scratch operand']
  %s0 = inlined_call_operand.vmem [shape: f32[16,128], index: 0, kind: input, shape index: {}]
  %s1 = inlined_call_operand.vmem [shape: bf16[128,32], index: 1, kind: input, shape index: {}]
  %s2 = inlined_call_operand.vmem [shape: f32[1,32], index: 2, kind: input, shape index: {}]
  %s3 = inlined_call_operand.vmem [shape: f32[16,32], index: 3, kind: input, shape index: {}]
  %s4 = inlined_call_operand.hbm [shape: f32[16,32], index: 4, kind: output, shape index: {}]
  %s5 = sld [smem:[#allocation0]]
  $region34: #{encoder_layer.13} parent=0
    _
  %s7 = ssub.s32 1, %s5
  %s8 = scalar_select 0, %s7, %s5
  $region1: #{encoder_layer.13} parent=0
    #allocation3 [shape = 'u8[8192]{0}', space=vmem, size = 0x2000, scoped, tag = 'output window, operand 0, single buffered']
    #allocation4 [shape = 's32[1]{0}', space=sflag, size = 0x4, scoped, tag = 'scoped memory for encoder_layer.13']
    %9 = vsyncpa [#allocation4], 0
    // Predicated region
    $region2: #{encoder_layer.13} parent=1 // pred_check
      _
    $region3: #{encoder_layer.13} parent=1 // pred_check_branch
      %11 = sbr.rel (0) target = $region5
    $region4: #{encoder_layer.13} parent=1 // pred_region
      _
    $region5: #{encoder_layer.13} parent=1 // pred_fallthru
      _
    // Predicated region
    $region6: #{encoder_layer.13} parent=1 // pred_check
      _
    $region7: #{encoder_layer.13} parent=1 // pred_check_branch
      %13 = sbr.rel (0) target = $region9
    $region8: #{encoder_layer.13} parent=1 // pred_region
      _
    $region9: #{encoder_layer.13} parent=1 // pred_fallthru
      _
    // Predicated region
    $region10: #{encoder_layer.13} parent=1 // pred_check
      _
    $region11: #{encoder_layer.13} parent=1 // pred_check_branch
      %15 = sbr.rel (0) target = $region13
    $region12: #{encoder_layer.13} parent=1 // pred_region
      _
    $region13: #{encoder_layer.13} parent=1 // pred_fallthru
      _
    // Predicated region
    $region14: #{encoder_layer.13} parent=1 // pred_check
      _
    $region15: #{encoder_layer.13} parent=1 // pred_check_branch
      %17 = sbr.rel (0) target = $region17
    $region16: #{encoder_layer.13} parent=1 // pred_region
      _
    $region17: #{encoder_layer.13} parent=1 // pred_fallthru
      _
    %p18 = scmp.eq.s32.totalorder 0, 0
    // Predicated region
    $region18: #{encoder_layer.13} parent=1 // pred_check
      %p19 = pneg %p18
    $region19: #{encoder_layer.13} parent=1 // pred_check_branch
      %21 = sbr.rel (%p19) target = $region21
    $region20: #{encoder_layer.13} parent=1 // pred_region
      %vm22 = vcmask 261120
      %23 = vst.msk [vmem:[#allocation2] sm:$0xff] %vm22, 0.0
      %24 = vst.msk [vmem:[#allocation2 + $0x8] sm:$0xff] %vm22, 0.0
    $region21: #{encoder_layer.13} parent=1 // pred_fallthru
      _
    %v25 = vld [vmem:[#allocation2] sm:$0xff]
    %v26 = vld [vmem:[#allocation2 + $0x8] sm:$0xff]
    %v27 = vld [vmem:[%s0] sm:$0xff]
    %v28 = vld [vmem:[%s0 + $0x8] sm:$0xff]
    %v29 = vpack.c.bf16 %v28, %v27
    %v30 = vld [vmem:[%s1] sm:$0xf]
    %v31 = vld [vmem:[%s1 + $0x4] sm:$0xf]
    %v32 = vld [vmem:[%s1 + $0x8] sm:$0xf]
    %v33 = vld [vmem:[%s1 + $0xc] sm:$0xf]
    %v34 = vld [vmem:[%s1 + $0x10] sm:$0xf]
    %v35 = vld [vmem:[%s1 + $0x14] sm:$0xf]
    %v36 = vld [vmem:[%s1 + $0x18] sm:$0xf]
    %v37 = vld [vmem:[%s1 + $0x1c] sm:$0xf]
    %v38 = vld [vmem:[%s1 + $0x20] sm:$0xf]
    %v39 = vld [vmem:[%s1 + $0x24] sm:$0xf]
    %v40 = vld [vmem:[%s1 + $0x28] sm:$0xf]
    %v41 = vld [vmem:[%s1 + $0x2c] sm:$0xf]
    %v42 = vld [vmem:[%s1 + $0x30] sm:$0xf]
    %v43 = vld [vmem:[%s1 + $0x34] sm:$0xf]
    %v44 = vld [vmem:[%s1 + $0x38] sm:$0xf]
    %v45 = vld [vmem:[%s1 + $0x3c] sm:$0xf]
    %v62 = vunpack.c.l.b16 %v30
    %v63 = vunpack.c.l.b16 %v31
    %v64 = vunpack.c.l.b16 %v32
    %v65 = vunpack.c.l.b16 %v33
    %v66 = vunpack.c.l.b16 %v34
    %v67 = vunpack.c.l.b16 %v35
    %v68 = vunpack.c.l.b16 %v36
    %v69 = vunpack.c.l.b16 %v37
    %v70 = vunpack.c.l.b16 %v38
    %v71 = vunpack.c.l.b16 %v39
    %v72 = vunpack.c.l.b16 %v40
    %v73 = vunpack.c.l.b16 %v41
    %v74 = vunpack.c.l.b16 %v42
    %v75 = vunpack.c.l.b16 %v43
    %v76 = vunpack.c.l.b16 %v44
    %v77 = vunpack.c.l.b16 %v45
    %v78 = vpack.c.b16 %v63, %v62
    %v79 = vpack.c.b16 %v65, %v64
    %v80 = vpack.c.b16 %v67, %v66
    %v81 = vpack.c.b16 %v69, %v68
    %v82 = vpack.c.b16 %v71, %v70
    %v83 = vpack.c.b16 %v73, %v72
    %v84 = vpack.c.b16 %v75, %v74
    %v85 = vpack.c.b16 %v77, %v76
    %94 = vmatpush.bf16.msra.mxu0 %v85
    %95 = vmatpush.bf16.msra.mxu0 %v84
    %96 = vmatpush.bf16.msra.mxu0 %v83
    %97 = vmatpush.bf16.msra.mxu0 %v82
    %98 = vmatpush.bf16.msra.mxu0 %v81
    %99 = vmatpush.bf16.msra.mxu0 %v80
    %100 = vmatpush.bf16.msra.mxu0 %v79
    %101 = vmatpush.bf16.msra.mxu0 %v78
    %102 = vmatmul.bf16.gmra.mxu0 %v29
    %v103 = vpop.f32.mrf.mxu0
    %v104 = vadd.f32 0.0, %v103
    %v105 = vpop.f32.mrf.mxu0
    %v106 = vadd.f32 0.0, %v105
    %107 = vdwg.mxu0
    %v108 = vadd.f32 %v25, %v104
    %v109 = vadd.f32 %v26, %v106
    %vm110 = vcmask 261120
    %111 = vst.msk [vmem:[#allocation2] sm:$0xff] %vm110, %v108
    %112 = vst.msk [vmem:[#allocation2 + $0x8] sm:$0xff] %vm110, %v109
    // Predicated region
    $region22: #{encoder_layer.13} parent=1 // pred_check
      %p113 = pneg %p18
    $region23: #{encoder_layer.13} parent=1 // pred_check_branch
      %115 = sbr.rel (%p113) target = $region25
    $region24: #{encoder_layer.13} parent=1 // pred_region
      %v116 = vld [vmem:[#allocation2] sm:$0xff]
      %v117 = vld [vmem:[#allocation2 + $0x8] sm:$0xff]
      %v118 = vld [vmem:[%s2] sm:$0x1]
      %v120 = vperm.slane %v118, 0
      %v122 = vadd.f32 %v116, %v120
      %v123 = vadd.f32 %v117, %v120
      %v124 = vld [vmem:[%s3] sm:$0xff]
      %v125 = vld [vmem:[%s3 + $0x8] sm:$0xff]
      %v126 = vadd.f32 %v122, %v124
      %v127 = vadd.f32 %v123, %v125
      %128 = vst.msk [vmem:[#allocation3] sm:$0xff] %vm110, %v126
      %129 = vst.msk [vmem:[#allocation3 + $0x8] sm:$0xff] %vm110, %v127
    $region25: #{encoder_layer.13} parent=1 // pred_fallthru
      _
    // Predicated region
    $region26: #{encoder_layer.13} parent=1 // pred_check
      _
    $region27: #{encoder_layer.13} parent=1 // pred_check_branch
      %131 = sbr.rel (0) target = $region29
    $region28: #{encoder_layer.13} parent=1 // pred_region
      %133 = vsyncadd [#allocation4], 0
      %s134 = sshll.u32 [#allocation3], 4
      %s135 = int_to_ptr.vmem [resolvable:$true] %s134
      %s136 = sshll.u32 %s4, 4
      %s137 = int_to_ptr.hbm [resolvable:$true] %s136
      %142 = dma.vmem_to_hbm [thread:$0]  %s135, 256, %s137, [#allocation4], 128, 128, 8
    $region29: #{encoder_layer.13} parent=1 // pred_fallthru
      _
    // Predicated region
    $region30: #{encoder_layer.13} parent=1 // pred_check
      _
    $region31: #{encoder_layer.13} parent=1 // pred_check_branch
      %144 = sbr.rel (0) target = $region33
    $region32: #{encoder_layer.13} parent=1 // pred_region
      %146 = dma.done [#allocation4], 256
    $region33: #{encoder_layer.13} parent=1 // pred_fallthru
      _
    %147 = vsyncpa [#allocation4], 1

</llo_original>
